<compile_context>
chip_gen: v7x
topology: tpu7x:2x2x1
jax: 0.10.0
libtpu: 0.0.40
codegen_flags: <defaults>
</compile_context>

<pallas_src>
import functools

import jax
import jax.numpy as jnp
from jax import lax
from jax.experimental import pallas as pl
from jax.experimental.pallas import tpu as pltpu


_SIGMA = 10.0
_INV_SIGMA = 1.0 / _SIGMA
_TILE_CANDIDATES = (512, 256, 128, 64, 32, 16, 8)


# ----------------------------------------------------------------------------
# Hardware-aware configuration helpers (all run at Python/trace time).
# ----------------------------------------------------------------------------
def _round_up(x, m):
    return -(-x // m) * m


def _vmem_capacity_bytes():
    try:
        return int(pltpu.get_tpu_info().vmem_capacity_bytes)
    except Exception:
        return 64 * 1024 * 1024  # conservative (v7x per-TensorCore)


def _device_kind():
    try:
        return jax.devices()[0].device_kind.lower()
    except Exception:
        return ""


def _affinity_bf16_default():
    # v6e / v7x have a bf16 VPU+EUP; keep the sqrt/exp stripe in f32 on older
    # generations (v5e and earlier).
    kind = _device_kind()
    return not any(g in kind for g in ("v2", "v3", "v4", "v5"))


def _vmem_estimate_bytes(n, d, t, affinity_bf16):
    """Rough upper bound on kernel VMEM: buffers + live (T, N) stripes."""
    n_lane = _round_up(n, 128)
    d_lane = _round_up(d, 128)
    w_bytes = 2 if affinity_bf16 else 4
    # (T, N) stripes live at once: xy (f32), dist (f32), w (+ bf16 MXU copy)
    stripes = t * n_lane * (4 + 4 + w_bytes + 2)
    # double-buffered streamed inputs (row block + row norms)
    streamed = 2 * (t * d_lane * 4 + t * 128 * 4)
    # resident bf16 Xc in both orientations + lane-layout row norms
    resident = 2 * (_round_up(d, 16) * n_lane * 2
                    + _round_up(n, 16) * d_lane * 2
                    + 8 * n_lane * 4)
    # (2, D, D) f32 accumulator block + small (T, D) temporaries
    out = 2 * 2 * _round_up(d, 8) * d_lane * 4
    temps = 3 * t * d_lane * 4
    return stripes + streamed + resident + out + temps


def _pick_tile_n(n, d, affinity_bf16, vmem_cap):
    divisors = [t for t in _TILE_CANDIDATES if t <= n and n % t == 0]
    if not divisors:
        return n  # small / ragged N: single full block
    budget = int(vmem_cap * 0.55)  # leave headroom for compiler scratch
    for t in divisors:             # descending: biggest tile that fits
        if _vmem_estimate_bytes(n, d, t, affinity_bf16) <= budget:
            return t
    return divisors[-1]


# ----------------------------------------------------------------------------
# Kernel: streamed gaussian-affinity scatter matrices.
#   For each row block of the centered data Xc it computes the (TILE_N, N)
#   affinity stripe W_blk = exp(-sqrt(dist)/sigma) (never written to HBM), the
#   block degrees d_blk, and accumulates
#     plane 0:  Xc_blk^T @ (d_blk * Xc_blk)               -> B = Xc^T D Xc
#     plane 1:  Xc_blk^T @ (d_blk * Xc_blk - W_blk @ Xc)  -> A = Xc^T (D-W) Xc
#   into the per-core resident (2, D, D) output.
# ----------------------------------------------------------------------------
def _lpp_scatter_kernel(xcb_ref, xxb_ref, xct_ref, xc_ref, yy_ref, ab_ref,
                        *, inv_sigma, affinity_bf16):
    @pl.when(pl.program_id(1) == 0)
    def _():
        ab_ref[...] = jnp.zeros(ab_ref.shape, ab_ref.dtype)

    xcb = xcb_ref[...]                       # (T, D) f32 centered row block
    xx = xxb_ref[...]                        # (T, 1) f32 ||xc_i||^2 (streamed)
    yy = yy_ref[...]                         # (1, N) f32 ||xc_j||^2 (lane layout)

    # gram stripe: bf16 MXU, f32 accumulation.  The resident Xc^T is pre-cast
    # and pre-transposed in the wrapper, so no per-step cast/vxpose of the
    # full (N, D) operand.
    xy = lax.dot_general(
        xcb.astype(jnp.bfloat16), xct_ref[...],
        dimension_numbers=(((1,), (0,)), ((), ())),
        preferred_element_type=jnp.float32)                  # (T, N)

    # squared distances (kept f32: cancellation-prone difference), clamped at 0
    dist = jnp.maximum(xx - 2.0 * xy + yy, 0.0)

    # gaussian affinity stripe; bf16 sqrt/exp on the EUP where supported
    if affinity_bf16:
        dist = dist.astype(jnp.bfloat16)
    w = jnp.exp(-jnp.sqrt(dist) * inv_sigma)                 # (T, N)

    # block degrees d_i = sum_j W_ij (f32 accumulation)
    deg = jnp.sum(w, axis=1, keepdims=True, dtype=jnp.float32)  # (T, 1)

    # dominant O(N^2 D) matmul: bf16 operands, f32 accumulation (was HIGHEST)
    w_lo = w if affinity_bf16 else w.astype(jnp.bfloat16)
    wx = lax.dot_general(
        w_lo, xc_ref[...],
        dimension_numbers=(((1,), (0,)), ((), ())),
        preferred_element_type=jnp.float32)                  # (T, D)

    s = xcb * deg                                            # (T, D) f32, B term

    # Two dots into separate accumulator planes: a lane-axis concat at small D
    # would force a relayout copy of the (T, 2D) tensor every step.  These
    # contractions are only O(N D^2) -> keep f32 / HIGHEST for eigh
    # conditioning.
    ab_ref[0] += lax.dot_general(
        xcb, s,
        dimension_numbers=(((0,), (0,)), ((), ())),
        precision=lax.Precision.HIGHEST,
        preferred_element_type=jnp.float32)                  # (D, D)  B partial
    ab_ref[1] += lax.dot_general(
        xcb, s - wx,
        dimension_numbers=(((0,), (0,)), ((), ())),
        precision=lax.Precision.HIGHEST,
        preferred_element_type=jnp.float32)                  # (D, D)  A partial


def lpp_scatter(xc, *, tile_n=None, num_cores=None, affinity_bf16=None):
    """Returns (A, B) = (Xc^T (D - W) Xc, Xc^T D Xc) for gaussian affinity W."""
    n, d = xc.shape
    if affinity_bf16 is None:
        affinity_bf16 = _affinity_bf16_default()
    vmem_cap = _vmem_capacity_bytes()
    if tile_n is None:
        tile_n = _pick_tile_n(n, d, affinity_bf16, vmem_cap)
    if n % tile_n != 0:
        raise ValueError(f"tile_n={tile_n} must divide N={n}")
    nb = n // tile_n
    if num_cores is None:
        # Leading "parallel" axis: sharded across TensorCores on v7x megacore,
        # a harmless sequential loop on single-TC v5e/v6e.
        num_cores = 2 if (nb >= 2 and nb % 2 == 0) else 1
    if nb % num_cores != 0:
        raise ValueError(f"num_cores={num_cores} must divide #row blocks={nb}")
    blocks_per_core = nb // num_cores

    xc32 = xc.astype(jnp.float32)
    xc_lo = xc32.astype(jnp.bfloat16)        # resident (N, D) bf16 for W @ Xc
    xct_lo = xc_lo.T                         # resident (D, N) bf16 for the gram
    rn = jnp.sum(xc32 * xc32, axis=1)        # per-row ||xc_i||^2, computed once
    yy = rn[None, :]                         # (1, N) lane layout
    xx_col = rn[:, None]                     # (N, 1) streamed per row block

    vmem_limit = int(min(
        0.92 * vmem_cap,
        max(32 * 1024 * 1024,
            1.6 * _vmem_estimate_bytes(n, d, tile_n, affinity_bf16))))

    def row_map(c, i):
        return (c * blocks_per_core + i, 0)

    kernel = functools.partial(_lpp_scatter_kernel,
                               inv_sigma=_INV_SIGMA,
                               affinity_bf16=affinity_bf16)

    # TODO(synk): for N where resident Xc + the (TILE_N, N) stripe exceed VMEM
    #             (earliest on v7x's 64 MiB), add a column-block grid axis with
    #             deg/wx partials in scratch instead of a resident Xc.
    ab = pl.pallas_call(
        kernel,
        out_shape=jax.ShapeDtypeStruct((num_cores, 2, d, d), jnp.float32),
        grid=(num_cores, blocks_per_core),
        in_specs=[
            pl.BlockSpec((tile_n, d), row_map),          # streamed f32 row block
            pl.BlockSpec((tile_n, 1), row_map),          # streamed ||xc_i||^2
            pl.BlockSpec((d, n), lambda c, i: (0, 0)),   # resident bf16 Xc^T
            pl.BlockSpec((n, d), lambda c, i: (0, 0)),   # resident bf16 Xc
            pl.BlockSpec((1, n), lambda c, i: (0, 0)),   # resident ||xc_j||^2
        ],
        out_specs=pl.BlockSpec((None, 2, d, d), lambda c, i: (c, 0, 0, 0)),
        compiler_params=pltpu.CompilerParams(
            dimension_semantics=("parallel", "arbitrary"),
            vmem_limit_bytes=vmem_limit),
    )(xc32, xx_col, xct_lo, xc_lo, yy)

    ab = jnp.sum(ab, axis=0)                 # reduce per-core partials
    b_mat = ab[0]
    a_mat = ab[1]
    return a_mat, b_mat


# ----------------------------------------------------------------------------
# Generalized symmetric eigenproblem A v = lam B v (ascending eigenvalues),
# equivalent to scipy.linalg.eigh(A, B).  Plain JAX (host LAPACK in the
# PyTorch version).  Note: the original adds `reg` only to throwaway copies
# A_/B_ and still calls eigh(A, B), so `reg` never affects the result.
# TODO(synk): generalized eigendecomposition has no Pallas equivalent; kept in
#             plain JAX (Cholesky reduction + jnp.linalg.eigh).
# ----------------------------------------------------------------------------
def _generalized_eigh(a, b):
    chol = jnp.linalg.cholesky(b)                               # B = L L^T
    linv_a = jax.scipy.linalg.solve_triangular(chol, a, lower=True)
    c = jax.scipy.linalg.solve_triangular(chol, linv_a.T, lower=True)
    c = 0.5 * (c + c.T)                                         # L^-1 A L^-T
    eig_val, u = jnp.linalg.eigh(c)                             # ascending
    eig_vec = jax.scipy.linalg.solve_triangular(chol.T, u, lower=False)
    return eig_val, eig_vec


# ----------------------------------------------------------------------------
# Full forward pass (method='naive'), matching LPPTorch.forward semantics.
# ----------------------------------------------------------------------------
@functools.partial(jax.jit,
                   static_argnames=("support_num", "n_components", "tile_n"))
def _lpp_forward_jit(concat_data, support_num, n_components, tile_n):
    x = concat_data.astype(jnp.float32)
    # centering (cheap O(N*D) elementwise; XLA fuses it, no kernel needed)
    xc = x - jnp.mean(x, axis=0, keepdims=True)

    a_mat, b_mat = lpp_scatter(xc, tile_n=tile_n)
    # guard tiny accumulation asymmetry before the eigensolve
    a_mat = 0.5 * (a_mat + a_mat.T)
    b_mat = 0.5 * (b_mat + b_mat.T)

    _, eig_vec = _generalized_eigh(a_mat, b_mat)
    # jnp.linalg.eigh already returns ascending eigenvalues -> no argsort.
    components = eig_vec / jnp.sqrt(
        jnp.sum(eig_vec * eig_vec, axis=0, keepdims=True))
    components = components[:, :n_components]

    # tiny (N,D)@(D,k) projection: inline XLA dot (a k=2-lane Pallas output
    # would be all masked partial stores + an extra HBM roundtrip of Xc).
    embedding = jnp.matmul(xc, components, precision=lax.Precision.HIGHEST)
    return embedding[:support_num], embedding[support_num:]


def lpp_forward(support_vector, query_vector, method="naive", n_components=2,
                tile_n=None):
    if method != "naive":
        raise NotImplementedError(method)
    concat_data = jnp.concatenate([support_vector, query_vector], axis=0)
    return _lpp_forward_jit(concat_data, support_vector.shape[0],
                            n_components, tile_n)


# ----------------------------------------------------------------------------
# Plain-JAX reference for the kernel's A/B outputs (same math, same dtypes).
# ----------------------------------------------------------------------------
def _lpp_scatter_reference(xc, affinity_bf16):
    xc = jnp.asarray(xc, jnp.float32)
    xc_lo = xc.astype(jnp.bfloat16)
    xx = jnp.sum(xc * xc, axis=1, keepdims=True)
    xy = jnp.dot(xc_lo, xc_lo.T, preferred_element_type=jnp.float32)
    dist = jnp.maximum(xx - 2.0 * xy + xx.T, 0.0)
    if affinity_bf16:
        dist = dist.astype(jnp.bfloat16)
    w = jnp.exp(-jnp.sqrt(dist) * _INV_SIGMA)
    deg = jnp.sum(w, axis=1, keepdims=True, dtype=jnp.float32)
    wx = jnp.dot(w.astype(jnp.bfloat16), xc_lo,
                 preferred_element_type=jnp.float32)
    b = jnp.matmul(xc.T, xc * deg, precision=lax.Precision.HIGHEST)
    a = jnp.matmul(xc.T, xc * deg - wx, precision=lax.Precision.HIGHEST)
    return a, b


if __name__ == "__main__":
    key = jax.random.PRNGKey(0)
    k_sup, k_qry = jax.random.split(key)
    # (samples, features); N = 64 > D = 32 so Xc^T D Xc is positive definite,
    # matching the regime in which the PyTorch module's eigh succeeds.
    support_vector = jax.random.normal(k_sup, (40, 32), dtype=jnp.float32)
    query_vector = jax.random.normal(k_qry, (24, 32), dtype=jnp.float32)

    # --- kernel vs plain-JAX reference for the scatter matrices -------------
    x_all = jnp.concatenate([support_vector, query_vector], axis=0)
    xc_all = x_all - jnp.mean(x_all, axis=0, keepdims=True)
    aff_bf16 = _affinity_bf16_default()
    a_want, b_want = _lpp_scatter_reference(xc_all, aff_bf16)

    # single block (grid 1x1), core-split (2x1) and streamed+split (2x2)
    for tile in (None, 32, 16):
        a_got, b_got = lpp_scatter(xc_all, tile_n=tile)
        jax.block_until_ready((a_got, b_got))
        for got, want in ((a_got, a_want), (b_got, b_want)):
            rel = jnp.max(jnp.abs(got - want)) / jnp.max(jnp.abs(want))
            assert float(rel) < 2e-2, float(rel)

    # --- end-to-end forward --------------------------------------------------
    support_emb, query_emb = lpp_forward(support_vector, query_vector)
    jax.block_until_ready((support_emb, query_emb))

    assert support_emb.shape == (40, 2), support_emb.shape
    assert query_emb.shape == (24, 2), query_emb.shape
    assert bool(jnp.all(jnp.isfinite(support_emb)))
    assert bool(jnp.all(jnp.isfinite(query_emb)))
    print("KERNEL_OK")
</pallas_src>

<mosaic_0001>
module attributes {stable_mosaic.version = 11 : i64} {
  func.func @_lpp_scatter_kernel(%arg0: i32, %arg1: i32, %arg2: memref<64x32xf32, #tpu.memory_space<vmem>>, %arg3: memref<64x1xf32, #tpu.memory_space<vmem>>, %arg4: memref<32x64xbf16, #tpu.memory_space<vmem>>, %arg5: memref<64x32xbf16, #tpu.memory_space<vmem>>, %arg6: memref<1x64xf32, #tpu.memory_space<vmem>>, %arg7: memref<1x2x32x32xf32, #tpu.memory_space<vmem>>) attributes {dimension_semantics = [#tpu.dimension_semantics<parallel>, #tpu.dimension_semantics<arbitrary>], iteration_bounds = array<i64: 1, 1>, scalar_prefetch = 0 : i64, scratch_operands = 0 : i64, tpu.core_type = #tpu.core_type<tc>, window_params = [{transform_indices = @transform_0, window_bounds = array<i64: 64, 32>}, {transform_indices = @transform_1, window_bounds = array<i64: 64, 1>}, {pipeline_mode = #tpu.pipeline_mode<synchronous>, transform_indices = @transform_2, window_bounds = array<i64: 32, 64>}, {pipeline_mode = #tpu.pipeline_mode<synchronous>, transform_indices = @transform_3, window_bounds = array<i64: 64, 32>}, {pipeline_mode = #tpu.pipeline_mode<synchronous>, transform_indices = @transform_4, window_bounds = array<i64: 1, 64>}, {transform_indices = @transform_5, window_bounds = array<i64: 1, 2, 32, 32>}]} {
    %c0_i32 = arith.constant 0 : i32
    %0 = arith.cmpi eq, %arg1, %c0_i32 : i32
    %1 = arith.extui %0 : i1 to i32
    %c0_i32_0 = arith.constant 0 : i32
    %2 = arith.cmpi ne, %1, %c0_i32_0 : i32
    scf.if %2 {
      %cst_33 = arith.constant 0.000000e+00 : f32
      %46 = vector.broadcast %cst_33 : f32 to vector<2x32x32xf32>
      %c0_34 = arith.constant 0 : index
      %c0_35 = arith.constant 0 : index
      %c0_36 = arith.constant 0 : index
      %c0_37 = arith.constant 0 : index
      %47 = vector.load %arg7[%c0_34, %c0_35, %c0_36, %c0_37] : memref<1x2x32x32xf32, #tpu.memory_space<vmem>>, vector<1x2x32x32xf32>
      %48 = vector.shape_cast %47 : vector<1x2x32x32xf32> to vector<2x32x32xf32>
      %49 = vector.shape_cast %46 : vector<2x32x32xf32> to vector<1x2x32x32xf32>
      tpu.vector_store %arg7[%c0_34, %c0_35, %c0_36, %c0_37], %49 {strides = array<i32>} : memref<1x2x32x32xf32, #tpu.memory_space<vmem>>, vector<1x2x32x32xf32>,
    } else {
    }
    %c0 = arith.constant 0 : index
    %c0_1 = arith.constant 0 : index
    %3 = vector.load %arg2[%c0, %c0_1] : memref<64x32xf32, #tpu.memory_space<vmem>>, vector<64x32xf32>
    %c0_2 = arith.constant 0 : index
    %c0_3 = arith.constant 0 : index
    %4 = vector.load %arg3[%c0_2, %c0_3] : memref<64x1xf32, #tpu.memory_space<vmem>>, vector<64x1xf32>
    %c0_4 = arith.constant 0 : index
    %c0_5 = arith.constant 0 : index
    %5 = vector.load %arg6[%c0_4, %c0_5] : memref<1x64xf32, #tpu.memory_space<vmem>>, vector<1x64xf32>
    %6 = arith.truncf %3 : vector<64x32xf32> to vector<64x32xbf16>
    %c0_6 = arith.constant 0 : index
    %c0_7 = arith.constant 0 : index
    %7 = vector.load %arg4[%c0_6, %c0_7] : memref<32x64xbf16, #tpu.memory_space<vmem>>, vector<32x64xbf16>
    %cst = arith.constant dense<0.000000e+00> : vector<64x64xf32>
    %8 = tpu.matmul %6, %7, %cst {dimension_numbers = #tpu.dot_dimension_numbers<[1], [0], [0], [1], [0, 0, 1, 1], [], []>} : vector<64x32xbf16>, vector<32x64xbf16>, vector<64x64xf32> -> vector<64x64xf32>
    %cst_8 = arith.constant 2.000000e+00 : f32
    %9 = vector.broadcast %cst_8 : f32 to vector<64x64xf32>
    %10 = arith.mulf %9, %8 : vector<64x64xf32>
    %11 = vector.broadcast %4 : vector<64x1xf32> to vector<64x64xf32>
    %12 = arith.subf %11, %10 : vector<64x64xf32>
    %13 = vector.broadcast %5 : vector<1x64xf32> to vector<64x64xf32>
    %14 = arith.addf %12, %13 : vector<64x64xf32>
    %cst_9 = arith.constant 0.000000e+00 : f32
    %15 = vector.broadcast %cst_9 : f32 to vector<64x64xf32>
    %16 = arith.maximumf %14, %15 : vector<64x64xf32>
    %17 = arith.truncf %16 : vector<64x64xf32> to vector<64x64xbf16>
    %18 = math.sqrt %17 : vector<64x64xbf16>
    %cst_10 = arith.constant 0.000000e+00 : bf16
    %19 = vector.broadcast %cst_10 : bf16 to vector<64x64xbf16>
    %20 = arith.subf %19, %18 : vector<64x64xbf16>
    %cst_11 = arith.constant 1.000980e-01 : bf16
    %21 = vector.broadcast %cst_11 : bf16 to vector<64x64xbf16>
    %22 = arith.mulf %20, %21 : vector<64x64xbf16>
    %23 = math.exp %22 : vector<64x64xbf16>
    %24 = arith.extf %23 : vector<64x64xbf16> to vector<64x64xf32>
    %cst_12 = arith.constant dense<0.000000e+00> : vector<64xf32>
    %25 = vector.multi_reduction <add>, %24, %cst_12 [1] : vector<64x64xf32> to vector<64xf32>
    %26 = vector.shape_cast %25 : vector<64xf32> to vector<64x1xf32>
    %c0_13 = arith.constant 0 : index
    %c0_14 = arith.constant 0 : index
    %27 = vector.load %arg5[%c0_13, %c0_14] : memref<64x32xbf16, #tpu.memory_space<vmem>>, vector<64x32xbf16>
    %cst_15 = arith.constant dense<0.000000e+00> : vector<64x32xf32>
    %28 = tpu.matmul %23, %27, %cst_15 {dimension_numbers = #tpu.dot_dimension_numbers<[1], [0], [0], [1], [0, 0, 1, 1], [], []>} : vector<64x64xbf16>, vector<64x32xbf16>, vector<64x32xf32> -> vector<64x32xf32>
    %29 = vector.broadcast %26 : vector<64x1xf32> to vector<64x32xf32>
    %30 = arith.mulf %3, %29 : vector<64x32xf32>
    %c0_16 = arith.constant 0 : index
    %c0_17 = arith.constant 0 : index
    %c0_18 = arith.constant 0 : index
    %c0_19 = arith.constant 0 : index
    %31 = vector.load %arg7[%c0_16, %c0_17, %c0_18, %c0_19] : memref<1x2x32x32xf32, #tpu.memory_space<vmem>>, vector<1x1x32x32xf32>
    %32 = vector.shape_cast %31 : vector<1x1x32x32xf32> to vector<32x32xf32>
    %cst_20 = arith.constant dense<0.000000e+00> : vector<32x32xf32>
    %33 = tpu.matmul %3, %30, %cst_20 {dimension_numbers = #tpu.dot_dimension_numbers<[0], [0], [1], [1], [0, 1, 1, 1], [], []>, precision = #tpu.contract_precision<fp32>} : vector<64x32xf32>, vector<64x32xf32>, vector<32x32xf32> -> vector<32x32xf32>
    %34 = arith.addf %32, %33 : vector<32x32xf32>
    %c0_21 = arith.constant 0 : index
    %c0_22 = arith.constant 0 : index
    %c0_23 = arith.constant 0 : index
    %c0_24 = arith.constant 0 : index
    %35 = vector.load %arg7[%c0_21, %c0_22, %c0_23, %c0_24] : memref<1x2x32x32xf32, #tpu.memory_space<vmem>>, vector<1x1x32x32xf32>
    %36 = vector.shape_cast %35 : vector<1x1x32x32xf32> to vector<32x32xf32>
    %37 = vector.shape_cast %34 : vector<32x32xf32> to vector<1x1x32x32xf32>
    tpu.vector_store %arg7[%c0_21, %c0_22, %c0_23, %c0_24], %37 {strides = array<i32>} : memref<1x2x32x32xf32, #tpu.memory_space<vmem>>, vector<1x1x32x32xf32>,
    %c0_25 = arith.constant 0 : index
    %c1 = arith.constant 1 : index
    %c0_26 = arith.constant 0 : index
    %c0_27 = arith.constant 0 : index
    %38 = vector.load %arg7[%c0_25, %c1, %c0_26, %c0_27] : memref<1x2x32x32xf32, #tpu.memory_space<vmem>>, vector<1x1x32x32xf32>
    %39 = vector.shape_cast %38 : vector<1x1x32x32xf32> to vector<32x32xf32>
    %40 = arith.subf %30, %28 : vector<64x32xf32>
    %cst_28 = arith.constant dense<0.000000e+00> : vector<32x32xf32>
    %41 = tpu.matmul %3, %40, %cst_28 {dimension_numbers = #tpu.dot_dimension_numbers<[0], [0], [1], [1], [0, 1, 1, 1], [], []>, precision = #tpu.contract_precision<fp32>} : vector<64x32xf32>, vector<64x32xf32>, vector<32x32xf32> -> vector<32x32xf32>
    %42 = arith.addf %39, %41 : vector<32x32xf32>
    %c0_29 = arith.constant 0 : index
    %c1_30 = arith.constant 1 : index
    %c0_31 = arith.constant 0 : index
    %c0_32 = arith.constant 0 : index
    %43 = vector.load %arg7[%c0_29, %c1_30, %c0_31, %c0_32] : memref<1x2x32x32xf32, #tpu.memory_space<vmem>>, vector<1x1x32x32xf32>
    %44 = vector.shape_cast %43 : vector<1x1x32x32xf32> to vector<32x32xf32>
    %45 = vector.shape_cast %42 : vector<32x32xf32> to vector<1x1x32x32xf32>
    tpu.vector_store %arg7[%c0_29, %c1_30, %c0_31, %c0_32], %45 {strides = array<i32>} : memref<1x2x32x32xf32, #tpu.memory_space<vmem>>, vector<1x1x32x32xf32>,
    return
  }
  func.func @transform_0(%arg0: i32, %arg1: i32) -> (i32, i32) {
    %c1_i32 = arith.constant 1 : i32
    %0 = arith.muli %arg0, %c1_i32 : i32
    %1 = arith.addi %0, %arg1 : i32
    %c0_i32 = arith.constant 0 : i32
    %c0_i32_0 = arith.constant 0 : i32
    return %1, %c0_i32 : i32, i32
  }
  func.func @transform_1(%arg0: i32, %arg1: i32) -> (i32, i32) {
    %c1_i32 = arith.constant 1 : i32
    %0 = arith.muli %arg0, %c1_i32 : i32
    %1 = arith.addi %0, %arg1 : i32
    %c0_i32 = arith.constant 0 : i32
    %c0_i32_0 = arith.constant 0 : i32
    return %1, %c0_i32 : i32, i32
  }
  func.func @transform_2(%arg0: i32, %arg1: i32) -> (i32, i32) {
    %c0_i32 = arith.constant 0 : i32
    %c0_i32_0 = arith.constant 0 : i32
    %c0_i32_1 = arith.constant 0 : i32
    return %c0_i32, %c0_i32_0 : i32, i32
  }
  func.func @transform_3(%arg0: i32, %arg1: i32) -> (i32, i32) {
    %c0_i32 = arith.constant 0 : i32
    %c0_i32_0 = arith.constant 0 : i32
    %c0_i32_1 = arith.constant 0 : i32
    return %c0_i32, %c0_i32_0 : i32, i32
  }
  func.func @transform_4(%arg0: i32, %arg1: i32) -> (i32, i32) {
    %c0_i32 = arith.constant 0 : i32
    %c0_i32_0 = arith.constant 0 : i32
    %c0_i32_1 = arith.constant 0 : i32
    return %c0_i32, %c0_i32_0 : i32, i32
  }
  func.func @transform_5(%arg0: i32, %arg1: i32) -> (i32, i32, i32, i32) {
    %c0_i32 = arith.constant 0 : i32
    %c0_i32_0 = arith.constant 0 : i32
    %c0_i32_1 = arith.constant 0 : i32
    %c0_i32_2 = arith.constant 0 : i32
    return %arg0, %c0_i32, %c0_i32_0, %c0_i32_1 : i32, i32, i32, i32
  }
}

</mosaic_0001>

<llo_original>
// kernel: tpu_custom_call.1
$region0: #{tpu_custom_call.1}
  #allocation0 [shape = 'u32[]', space=smem, size = 0x4, offset = 0x4, fixed_abs, tag = 'smem constant byte address 0x4 - core index']
  #allocation1 [shape = 'u32[144,128]{1,0:T(1,128)}', space=vmem, size = 0x12000, scoped, tag = 'internal scratch']
  %s0 = inlined_call_operand.vmem [shape: f32[64,32], index: 0, kind: input, shape index: {}]
  %s1 = inlined_call_operand.vmem [shape: f32[64,1], index: 1, kind: input, shape index: {}]
  %s2 = inlined_call_operand.vmem [shape: bf16[32,64], index: 2, kind: input, shape index: {}]
  %s3 = inlined_call_operand.vmem [shape: bf16[64,32], index: 3, kind: input, shape index: {}]
  %s4 = inlined_call_operand.vmem [shape: f32[1,64], index: 4, kind: input, shape index: {}]
  %s5 = inlined_call_operand.hbm [shape: f32[1,2,32,32], index: 5, kind: output, shape index: {}]
  %s6 = sld [smem:[#allocation0]]
  $region34: #{tpu_custom_call.1} parent=0
    _
  %s8 = ssub.s32 1, %s6
  %s9 = scalar_select 0, %s8, %s6
  $region1: #{tpu_custom_call.1} parent=0
    #allocation2 [shape = 'u8[32768]{0}', space=vmem, size = 0x8000, scoped, tag = 'output window, operand 0, single buffered']
    #allocation3 [shape = 's32[1]{0}', space=sflag, size = 0x4, scoped, tag = 'scoped memory for tpu_custom_call.1']
    %10 = vsyncpa [#allocation3], 0
    // Predicated region
    $region2: #{tpu_custom_call.1} parent=1 // pred_check
      _
    $region3: #{tpu_custom_call.1} parent=1 // pred_check_branch
      %12 = sbr.rel (0) target = $region5
    $region4: #{tpu_custom_call.1} parent=1 // pred_region
      %s13 = sadd.s32 0, 0
      %s14 = smul.u32 8, %s13
      %p15 = scmp.lt.s32.totalorder %s14, 7
      %s16 = scalar_select %p15, %s14, 7
      %s17 = smul.addr %s16, 8
      %s18 = scalar_lea.vmem %s0, %s17
      %s19 = sadd.s32 0, 0
      %s20 = smul.u32 8, %s19
    $region5: #{tpu_custom_call.1} parent=1 // pred_fallthru
      _
    // Predicated region
    $region6: #{tpu_custom_call.1} parent=1 // pred_check
      _
    $region7: #{tpu_custom_call.1} parent=1 // pred_check_branch
      %22 = sbr.rel (0) target = $region9
    $region8: #{tpu_custom_call.1} parent=1 // pred_region
      %s23 = sadd.s32 0, 0
      %s24 = smul.u32 8, %s23
      %p25 = scmp.lt.s32.totalorder %s24, 7
      %s26 = scalar_select %p25, %s24, 7
      %s27 = smul.addr %s26, 8
      %s28 = scalar_lea.vmem %s1, %s27
      %s29 = sadd.s32 0, 0
      %s30 = smul.u32 8, %s29
    $region9: #{tpu_custom_call.1} parent=1 // pred_fallthru
      _
    // Predicated region
    $region10: #{tpu_custom_call.1} parent=1 // pred_check
      _
    $region11: #{tpu_custom_call.1} parent=1 // pred_check_branch
      %32 = sbr.rel (0) target = $region13
    $region12: #{tpu_custom_call.1} parent=1 // pred_region
      _
    $region13: #{tpu_custom_call.1} parent=1 // pred_fallthru
      _
    // Predicated region
    $region14: #{tpu_custom_call.1} parent=1 // pred_check
      _
    $region15: #{tpu_custom_call.1} parent=1 // pred_check_branch
      %34 = sbr.rel (0) target = $region17
    $region16: #{tpu_custom_call.1} parent=1 // pred_region
      _
    $region17: #{tpu_custom_call.1} parent=1 // pred_fallthru
      _
    // Predicated region
    $region18: #{tpu_custom_call.1} parent=1 // pred_check
      _
    $region19: #{tpu_custom_call.1} parent=1 // pred_check_branch
      %36 = sbr.rel (0) target = $region21
    $region20: #{tpu_custom_call.1} parent=1 // pred_region
      _
    $region21: #{tpu_custom_call.1} parent=1 // pred_fallthru
      _
    %s37 = sadd.s32 0, 0
    %s38 = smul.u32 8, %s37
    %p39 = scmp.lt.s32.totalorder %s38, 7
    %s40 = scalar_select %p39, %s38, 7
    %s41 = smul.addr %s40, 8
    %s42 = scalar_lea.vmem %s0, %s41
    %s43 = sadd.s32 0, 0
    %s44 = smul.u32 8, %s43
    %p45 = scmp.lt.s32.totalorder %s44, 7
    %s46 = scalar_select %p45, %s44, 7
    %s47 = smul.addr %s46, 8
    %s48 = scalar_lea.vmem %s1, %s47
    %s49 = sadd.s32 0, 0
    %s50 = smul.u32 8, %s49
    %p51 = scmp.lt.s32.totalorder %s50, 7
    %s52 = scalar_select %p51, %s50, 7
    %s53 = smul.addr %s52, 8
    %s54 = scalar_lea.vmem %s0, %s53
    %s55 = sadd.s32 0, 0
    %s56 = smul.u32 8, %s55
    %s57 = sadd.s32 0, 0
    %s58 = smul.u32 8, %s57
    %p59 = scmp.lt.s32.totalorder %s58, 7
    %s60 = scalar_select %p59, %s58, 7
    %s61 = smul.addr %s60, 8
    %s62 = scalar_lea.vmem %s1, %s61
    %s63 = sadd.s32 0, 0
    %s64 = smul.u32 8, %s63
    %p67 = scmp.eq.s32.totalorder 0, 0
    // Predicated region
    $region22: #{tpu_custom_call.1} parent=1 // pred_check
      %p68 = pneg %p67
    $region23: #{tpu_custom_call.1} parent=1 // pred_check_branch
      %70 = sbr.rel (%p68) target = $region25
    $region24: #{tpu_custom_call.1} parent=1 // pred_region
      %vm71 = vcmask 261120
      %72 = vst.msk [vmem:[#allocation2] sm:$0xff] %vm71, 0.0
      %73 = vst.msk [vmem:[#allocation2 + $0x8] sm:$0xff] %vm71, 0.0
      %74 = vst.msk [vmem:[#allocation2 + $0x10] sm:$0xff] %vm71, 0.0
      %75 = vst.msk [vmem:[#allocation2 + $0x18] sm:$0xff] %vm71, 0.0
      %76 = vst.msk [vmem:[#allocation2 + $0x20] sm:$0xff] %vm71, 0.0
      %77 = vst.msk [vmem:[#allocation2 + $0x28] sm:$0xff] %vm71, 0.0
      %78 = vst.msk [vmem:[#allocation2 + $0x30] sm:$0xff] %vm71, 0.0
      %79 = vst.msk [vmem:[#allocation2 + $0x38] sm:$0xff] %vm71, 0.0
    $region25: #{tpu_custom_call.1} parent=1 // pred_fallthru
      _
    %v80 = vld [vmem:[%s54] sm:$0xff]
    %v81 = vld [vmem:[%s54 + $0x8] sm:$0xff]
    %v82 = vld [vmem:[%s54 + $0x10] sm:$0xff]
    %v83 = vld [vmem:[%s54 + $0x18] sm:$0xff]
    %v84 = vld [vmem:[%s54 + $0x20] sm:$0xff]
    %v85 = vld [vmem:[%s54 + $0x28] sm:$0xff]
    %v86 = vld [vmem:[%s54 + $0x30] sm:$0xff]
    %v87 = vld [vmem:[%s54 + $0x38] sm:$0xff]
    %v88 = vld [vmem:[%s62] sm:$0xff]
    %v89 = vld [vmem:[%s62 + $0x8] sm:$0xff]
    %v90 = vld [vmem:[%s62 + $0x10] sm:$0xff]
    %v91 = vld [vmem:[%s62 + $0x18] sm:$0xff]
    %v92 = vld [vmem:[%s62 + $0x20] sm:$0xff]
    %v93 = vld [vmem:[%s62 + $0x28] sm:$0xff]
    %v94 = vld [vmem:[%s62 + $0x30] sm:$0xff]
    %v95 = vld [vmem:[%s62 + $0x38] sm:$0xff]
    %v96 = vld [vmem:[%s4] sm:$0x1]
    %v97 = vpack.c.bf16 %v81, %v80
    %v98 = vpack.c.bf16 %v83, %v82
    %v99 = vpack.c.bf16 %v85, %v84
    %v100 = vpack.c.bf16 %v87, %v86
    %v101 = vld [vmem:[%s2] sm:$0xf]
    %v102 = vld [vmem:[%s2 + $0x4] sm:$0xf]
    %v103 = vld [vmem:[%s2 + $0x8] sm:$0xf]
    %v104 = vld [vmem:[%s2 + $0xc] sm:$0xf]
    %v109 = vunpack.c.l.b16 %v101
    %v110 = vunpack.c.l.b16 %v102
    %v111 = vunpack.c.l.b16 %v103
    %v112 = vunpack.c.l.b16 %v104
    %v113 = vpack.c.b16 %v110, %v109
    %v114 = vpack.c.b16 %v112, %v111
    %vm117 = vcmask 261120
    %v119 = vsel %vm117, %v97, 0
    %v122 = vsel %vm117, %v98, 0
    %v125 = vsel %vm117, %v99, 0
    %v128 = vsel %vm117, %v100, 0
    %130 = vmatprep.subr.bf16.mxu0 0
    %131 = vmatpush1.bf16.msra.mxu0 %v113
    %132 = vmatprep.subr.bf16.mxu0 0
    %133 = vmatpush1.bf16.msra.mxu0 %v114
    %134 = vmatprep.subr.bf16.mxu0 0
    %135 = vmatpush1.bf16.msra.mxu0 0
    %136 = vmatprep.subr.bf16.mxu0 0
    %137 = vmatpush1.bf16.msra.mxu0 0
    %138 = vmatprep.subr.bf16.mxu0 0
    %139 = vmatpush1.bf16.msra.mxu0 0
    %140 = vmatprep.subr.bf16.mxu0 0
    %141 = vmatpush1.bf16.msra.mxu0 0
    %142 = vmatprep.subr.bf16.mxu0 0
    %143 = vmatpush1.bf16.msra.mxu0 0
    %144 = vmatprep.subr.bf16.mxu0 0
    %145 = vmatpush1.bf16.msra.mxu0 0
    %146 = vmatprep.subr.bf16.mxu0 0
    %147 = vmatpush1.bf16.msra.mxu0 0
    %148 = vmatprep.subr.bf16.mxu0 0
    %149 = vmatpush1.bf16.msra.mxu0 0
    %150 = vmatprep.subr.bf16.mxu0 0
    %151 = vmatpush1.bf16.msra.mxu0 0
    %152 = vmatprep.subr.bf16.mxu0 0
    %153 = vmatpush1.bf16.msra.mxu0 0
    %154 = vmatprep.subr.bf16.mxu0 0
    %155 = vmatpush1.bf16.msra.mxu0 0
    %156 = vmatprep.subr.bf16.mxu0 0
    %157 = vmatpush1.bf16.msra.mxu0 0
    %158 = vmatprep.subr.bf16.mxu0 0
    %159 = vmatpush1.bf16.msra.mxu0 0
    %160 = vmatprep.subr.bf16.mxu0 0
    %161 = vmatpush1.bf16.msra.mxu0 0
    %162 = vmatprep.mubr.bf16.mxu0 0
    %163 = vmatmul.mubr.bf16.gmra.mrb[0].mxu0 %v119
    %v164 = vpop.f32.mrb[0].mxu0
    %v165 = vadd.f32 0.0, %v164
    %v166 = vpop.f32.mrb[0].mxu0
    %v167 = vpop.f32.mrb[0].mxu0
    %v168 = vadd.f32 0.0, %v167
    %v169 = vpop.f32.mrb[0].mxu0
    %170 = vmatprep.mubr.bf16.mxu0 0
    %171 = vmatmul.mubr.bf16.gmra.mrb[0].mxu0 %v122
    %v172 = vpop.f32.mrb[0].mxu0
    %v173 = vadd.f32 0.0, %v172
    %v174 = vpop.f32.mrb[0].mxu0
    %v175 = vpop.f32.mrb[0].mxu0
    %v176 = vadd.f32 0.0, %v175
    %v177 = vpop.f32.mrb[0].mxu0
    %178 = vmatprep.mubr.bf16.mxu0 0
    %179 = vmatmul.mubr.bf16.gmra.mrb[0].mxu0 %v125
    %v180 = vpop.f32.mrb[0].mxu0
    %v181 = vadd.f32 0.0, %v180
    %v182 = vpop.f32.mrb[0].mxu0
    %v183 = vpop.f32.mrb[0].mxu0
    %v184 = vadd.f32 0.0, %v183
    %v185 = vpop.f32.mrb[0].mxu0
    %186 = vmatprep.mubr.bf16.mxu0 0
    %187 = vmatmul.mubr.bf16.gmra.mrb[0].mxu0 %v128
    %v188 = vpop.f32.mrb[0].mxu0
    %v189 = vadd.f32 0.0, %v188
    %v190 = vpop.f32.mrb[0].mxu0
    %v191 = vpop.f32.mrb[0].mxu0
    %v192 = vadd.f32 0.0, %v191
    %v193 = vpop.f32.mrb[0].mxu0
    %194 = vdwg.mxu0
    %v195 = vmul.f32 %v165, 2.0
    %v196 = vmul.f32 %v168, 2.0
    %v197 = vmul.f32 %v173, 2.0
    %v198 = vmul.f32 %v176, 2.0
    %v199 = vmul.f32 %v181, 2.0
    %v200 = vmul.f32 %v184, 2.0
    %v201 = vmul.f32 %v189, 2.0
    %v202 = vmul.f32 %v192, 2.0
    %204 = vset.pattern.permute.xlu0 0
    %205 = vperm.xlu0 %204, %v88
    %v206 = vpop.permute.xlu0 %205
    %209 = vset.pattern.permute.xlu0 0
    %210 = vperm.xlu0 %209, %v89
    %v211 = vpop.permute.xlu0 %210
    %214 = vset.pattern.permute.xlu0 0
    %215 = vperm.xlu0 %214, %v90
    %v216 = vpop.permute.xlu0 %215
    %219 = vset.pattern.permute.xlu0 0
    %220 = vperm.xlu0 %219, %v91
    %v221 = vpop.permute.xlu0 %220
    %224 = vset.pattern.permute.xlu0 0
    %225 = vperm.xlu0 %224, %v92
    %v226 = vpop.permute.xlu0 %225
    %229 = vset.pattern.permute.xlu0 0
    %230 = vperm.xlu0 %229, %v93
    %v231 = vpop.permute.xlu0 %230
    %234 = vset.pattern.permute.xlu0 0
    %235 = vperm.xlu0 %234, %v94
    %v236 = vpop.permute.xlu0 %235
    %239 = vset.pattern.permute.xlu0 0
    %240 = vperm.xlu0 %239, %v95
    %v241 = vpop.permute.xlu0 %240
    %v243 = vsub.f32 %v206, %v195
    %v244 = vsub.f32 %v211, %v196
    %v245 = vsub.f32 %v216, %v197
    %v246 = vsub.f32 %v221, %v198
    %v247 = vsub.f32 %v226, %v199
    %v248 = vsub.f32 %v231, %v200
    %v249 = vsub.f32 %v236, %v201
    %v250 = vsub.f32 %v241, %v202
    %v252 = vlaneseq
    %v253 = vshrl.u32 %v252, 7
    %v254 = vsub.s32 0, %v253
    %v255 = vrot.slane %v96, %v254
    %v257 = vadd.f32 %v243, %v255
    %v258 = vadd.f32 %v244, %v255
    %v259 = vadd.f32 %v245, %v255
    %v260 = vadd.f32 %v246, %v255
    %v261 = vadd.f32 %v247, %v255
    %v262 = vadd.f32 %v248, %v255
    %v263 = vadd.f32 %v249, %v255
    %v264 = vadd.f32 %v250, %v255
    %v265 = vmax.f32 %v257, 0.0
    %v266 = vmax.f32 %v258, 0.0
    %v267 = vmax.f32 %v259, 0.0
    %v268 = vmax.f32 %v260, 0.0
    %v269 = vmax.f32 %v261, 0.0
    %v270 = vmax.f32 %v262, 0.0
    %v271 = vmax.f32 %v263, 0.0
    %v272 = vmax.f32 %v264, 0.0
    %v273 = vpack.c.bf16 %v266, %v265
    %v274 = vpack.c.bf16 %v268, %v267
    %v275 = vpack.c.bf16 %v270, %v269
    %v276 = vpack.c.bf16 %v272, %v271
    %v277 = vrsqrt.bf16.pop %v273
    %v278 = vmul.bf16 %v273, %v277
    %vm280 = vcmp.eq.bf16.partialorder %v273, 2139127680
    %v281 = vsel %vm280, %v273, %v278
    %vm283 = vcmp.eq.bf16.partialorder %v273, 0
    %v284 = vand.u32 2147450879, 0
    %v285 = vand.u32 %v273, 2147516416
    %v286 = vor.u32 %v284, %v285
    %v287 = vsel %vm283, %v286, %v281
    %v288 = vrsqrt.bf16.pop %v274
    %v289 = vmul.bf16 %v274, %v288
    %vm291 = vcmp.eq.bf16.partialorder %v274, 2139127680
    %v292 = vsel %vm291, %v274, %v289
    %vm294 = vcmp.eq.bf16.partialorder %v274, 0
    %v295 = vand.u32 2147450879, 0
    %v296 = vand.u32 %v274, 2147516416
    %v297 = vor.u32 %v295, %v296
    %v298 = vsel %vm294, %v297, %v292
    %v299 = vrsqrt.bf16.pop %v275
    %v300 = vmul.bf16 %v275, %v299
    %vm302 = vcmp.eq.bf16.partialorder %v275, 2139127680
    %v303 = vsel %vm302, %v275, %v300
    %vm305 = vcmp.eq.bf16.partialorder %v275, 0
    %v306 = vand.u32 2147450879, 0
    %v307 = vand.u32 %v275, 2147516416
    %v308 = vor.u32 %v306, %v307
    %v309 = vsel %vm305, %v308, %v303
    %v310 = vrsqrt.bf16.pop %v276
    %v311 = vmul.bf16 %v276, %v310
    %vm313 = vcmp.eq.bf16.partialorder %v276, 2139127680
    %v314 = vsel %vm313, %v276, %v311
    %vm316 = vcmp.eq.bf16.partialorder %v276, 0
    %v317 = vand.u32 2147450879, 0
    %v318 = vand.u32 %v276, 2147516416
    %v319 = vor.u32 %v317, %v318
    %v320 = vsel %vm316, %v319, %v314
    %v321 = vsub.bf16 0, %v287
    %v322 = vsub.bf16 0, %v298
    %v323 = vsub.bf16 0, %v309
    %v324 = vsub.bf16 0, %v320
    %v325 = vmul.bf16 %v321, 1036860877
    %v326 = vmul.bf16 %v322, 1036860877
    %v327 = vmul.bf16 %v323, 1036860877
    %v328 = vmul.bf16 %v324, 1036860877
    %v330 = vmul.bf16 %v325, 1069105081
    %v331 = vpow.bf16.pop %v330
    %v333 = vmul.bf16 %v326, 1069105081
    %v334 = vpow.bf16.pop %v333
    %v336 = vmul.bf16 %v327, 1069105081
    %v337 = vpow.bf16.pop %v336
    %v339 = vmul.bf16 %v328, 1069105081
    %v340 = vpow.bf16.pop %v339
    %v341 = vunpack.c.l.bf16 %v331
    %v342 = vunpack.c.h.bf16 %v331
    %v343 = vunpack.c.l.bf16 %v334
    %v344 = vunpack.c.h.bf16 %v334
    %v345 = vunpack.c.l.bf16 %v337
    %v346 = vunpack.c.h.bf16 %v337
    %v347 = vunpack.c.l.bf16 %v340
    %v348 = vunpack.c.h.bf16 %v340
    %vm349 = vcmask 523264
    %v350 = vsel %vm349, %v341, 0.0
    %351 = vadd.xlane.f32.xlu0 %v350
    %v352 = vpop.xlane.xlu0 %351
    %v353 = vsel %vm349, %v342, 0.0
    %354 = vadd.xlane.f32.xlu0 %v353
    %v355 = vpop.xlane.xlu0 %354
    %v356 = vsel %vm349, %v343, 0.0
    %357 = vadd.xlane.f32.xlu0 %v356
    %v358 = vpop.xlane.xlu0 %357
    %v359 = vsel %vm349, %v344, 0.0
    %360 = vadd.xlane.f32.xlu0 %v359
    %v361 = vpop.xlane.xlu0 %360
    %v362 = vsel %vm349, %v345, 0.0
    %363 = vadd.xlane.f32.xlu0 %v362
    %v364 = vpop.xlane.xlu0 %363
    %v365 = vsel %vm349, %v346, 0.0
    %366 = vadd.xlane.f32.xlu0 %v365
    %v367 = vpop.xlane.xlu0 %366
    %v368 = vsel %vm349, %v347, 0.0
    %369 = vadd.xlane.f32.xlu0 %v368
    %v370 = vpop.xlane.xlu0 %369
    %v371 = vsel %vm349, %v348, 0.0
    %372 = vadd.xlane.f32.xlu0 %v371
    %v373 = vpop.xlane.xlu0 %372
    %v374 = vld [vmem:[%s3] sm:$0xf]
    %v375 = vld [vmem:[%s3 + $0x4] sm:$0xf]
    %v376 = vld [vmem:[%s3 + $0x8] sm:$0xf]
    %v377 = vld [vmem:[%s3 + $0xc] sm:$0xf]
    %v378 = vld [vmem:[%s3 + $0x10] sm:$0xf]
    %v379 = vld [vmem:[%s3 + $0x14] sm:$0xf]
    %v380 = vld [vmem:[%s3 + $0x18] sm:$0xf]
    %v381 = vld [vmem:[%s3 + $0x1c] sm:$0xf]
    %v390 = vunpack.c.l.b16 %v374
    %v391 = vunpack.c.l.b16 %v375
    %v392 = vunpack.c.l.b16 %v376
    %v393 = vunpack.c.l.b16 %v377
    %v394 = vunpack.c.l.b16 %v378
    %v395 = vunpack.c.l.b16 %v379
    %v396 = vunpack.c.l.b16 %v380
    %v397 = vunpack.c.l.b16 %v381
    %v398 = vpack.c.b16 %v391, %v390
    %v399 = vpack.c.b16 %v393, %v392
    %v400 = vpack.c.b16 %v395, %v394
    %v401 = vpack.c.b16 %v397, %v396
    %v407 = vsel %vm349, %v331, 0
    %v410 = vsel %vm349, %v334, 0
    %v413 = vsel %vm349, %v337, 0
    %v416 = vsel %vm349, %v340, 0
    %418 = vmatprep.subr.bf16.mxu0 0
    %419 = vmatpush1.bf16.msra.mxu0 %v398
    %420 = vmatprep.subr.bf16.mxu0 0
    %421 = vmatpush1.bf16.msra.mxu0 %v399
    %422 = vmatprep.subr.bf16.mxu0 0
    %423 = vmatpush1.bf16.msra.mxu0 %v400
    %424 = vmatprep.subr.bf16.mxu0 0
    %425 = vmatpush1.bf16.msra.mxu0 %v401
    %426 = vmatprep.subr.bf16.mxu0 0
    %427 = vmatpush1.bf16.msra.mxu0 0
    %428 = vmatprep.subr.bf16.mxu0 0
    %429 = vmatpush1.bf16.msra.mxu0 0
    %430 = vmatprep.subr.bf16.mxu0 0
    %431 = vmatpush1.bf16.msra.mxu0 0
    %432 = vmatprep.subr.bf16.mxu0 0
    %433 = vmatpush1.bf16.msra.mxu0 0
    %434 = vmatprep.subr.bf16.mxu0 0
    %435 = vmatpush1.bf16.msra.mxu0 0
    %436 = vmatprep.subr.bf16.mxu0 0
    %437 = vmatpush1.bf16.msra.mxu0 0
    %438 = vmatprep.subr.bf16.mxu0 0
    %439 = vmatpush1.bf16.msra.mxu0 0
    %440 = vmatprep.subr.bf16.mxu0 0
    %441 = vmatpush1.bf16.msra.mxu0 0
    %442 = vmatprep.subr.bf16.mxu0 0
    %443 = vmatpush1.bf16.msra.mxu0 0
    %444 = vmatprep.subr.bf16.mxu0 0
    %445 = vmatpush1.bf16.msra.mxu0 0
    %446 = vmatprep.subr.bf16.mxu0 0
    %447 = vmatpush1.bf16.msra.mxu0 0
    %448 = vmatprep.subr.bf16.mxu0 0
    %449 = vmatpush1.bf16.msra.mxu0 0
    %450 = vmatprep.mubr.bf16.mxu0 0
    %451 = vmatmul.mubr.bf16.gmra.mrb[0].mxu0 %v407
    %v452 = vpop.f32.mrb[0].mxu0
    %v453 = vadd.f32 0.0, %v452
    %v454 = vpop.f32.mrb[0].mxu0
    %v455 = vpop.f32.mrb[0].mxu0
    %v456 = vadd.f32 0.0, %v455
    %v457 = vpop.f32.mrb[0].mxu0
    %458 = vmatprep.mubr.bf16.mxu0 0
    %459 = vmatmul.mubr.bf16.gmra.mrb[0].mxu0 %v410
    %v460 = vpop.f32.mrb[0].mxu0
    %v461 = vadd.f32 0.0, %v460
    %v462 = vpop.f32.mrb[0].mxu0
    %v463 = vpop.f32.mrb[0].mxu0
    %v464 = vadd.f32 0.0, %v463
    %v465 = vpop.f32.mrb[0].mxu0
    %466 = vmatprep.mubr.bf16.mxu0 0
    %467 = vmatmul.mubr.bf16.gmra.mrb[0].mxu0 %v413
    %v468 = vpop.f32.mrb[0].mxu0
    %v469 = vadd.f32 0.0, %v468
    %v470 = vpop.f32.mrb[0].mxu0
    %v471 = vpop.f32.mrb[0].mxu0
    %v472 = vadd.f32 0.0, %v471
    %v473 = vpop.f32.mrb[0].mxu0
    %474 = vmatprep.mubr.bf16.mxu0 0
    %475 = vmatmul.mubr.bf16.gmra.mrb[0].mxu0 %v416
    %v476 = vpop.f32.mrb[0].mxu0
    %v477 = vadd.f32 0.0, %v476
    %v478 = vpop.f32.mrb[0].mxu0
    %v479 = vpop.f32.mrb[0].mxu0
    %v480 = vadd.f32 0.0, %v479
    %v481 = vpop.f32.mrb[0].mxu0
    %482 = vdwg.mxu0
    %v483 = vmul.f32 %v80, %v352
    %v484 = vmul.f32 %v81, %v355
    %v485 = vmul.f32 %v82, %v358
    %v486 = vmul.f32 %v83, %v361
    %v487 = vmul.f32 %v84, %v364
    %v488 = vmul.f32 %v85, %v367
    %v489 = vmul.f32 %v86, %v370
    %v490 = vmul.f32 %v87, %v373
    %v491 = vld [vmem:[#allocation2] sm:$0xff]
    %v492 = vld [vmem:[#allocation2 + $0x8] sm:$0xff]
    %v493 = vld [vmem:[#allocation2 + $0x10] sm:$0xff]
    %v494 = vld [vmem:[#allocation2 + $0x18] sm:$0xff]
    %495 = vxpose.xlu0.b32.start [1/16] %v80, 128
    %496 = vxpose.xlu0.b32.cont [2/16] %v81, 128
    %497 = vxpose.xlu0.b32.cont [3/16] %v82, 128
    %498 = vxpose.xlu0.b32.cont [4/16] %v83, 128
    %499 = vxpose.xlu0.b32.cont [5/16] %v84, 128
    %500 = vxpose.xlu0.b32.cont [6/16] %v85, 128
    %501 = vxpose.xlu0.b32.cont [7/16] %v86, 128
    %502 = vxpose.xlu0.b32.cont [8/16] %v87, 128
    %503 = vxpose.xlu0.b32.cont [9/16] 0.0, 128
    %504 = vxpose.xlu0.b32.cont [10/16] 0.0, 128
    %505 = vxpose.xlu0.b32.cont [11/16] 0.0, 128
    %506 = vxpose.xlu0.b32.cont [12/16] 0.0, 128
    %507 = vxpose.xlu0.b32.cont [13/16] 0.0, 128
    %508 = vxpose.xlu0.b32.cont [14/16] 0.0, 128
    %509 = vxpose.xlu0.b32.cont [15/16] 0.0, 128
    %510 = vxpose.xlu0.b32.end [16/16] 0.0, 128
    %v511 = vpop.trf.xlu0
    %v512 = vpop.trf.xlu0
    %v513 = vpop.trf.xlu0
    %v514 = vpop.trf.xlu0
    %v515 = vpop.trf.xlu0
    %v516 = vpop.trf.xlu0
    %v517 = vpop.trf.xlu0
    %v518 = vpop.trf.xlu0
    %v519 = vpop.trf.xlu0
    %v520 = vpop.trf.xlu0
    %v521 = vpop.trf.xlu0
    %v522 = vpop.trf.xlu0
    %v523 = vpop.trf.xlu0
    %v524 = vpop.trf.xlu0
    %v525 = vpop.trf.xlu0
    %v526 = vpop.trf.xlu0
    %v528 = vsel %vm349, %v511, 0
    %v531 = vsel %vm349, %v512, 0
    %v534 = vsel %vm349, %v513, 0
    %v537 = vsel %vm349, %v514, 0
    %539 = vmatprep.subr.mxu0 0.0
    %v540 = vand.u32 %v483, 4294901760
    %541 = vmatpush1.msra.mxu0 %v540
    %542 = vmatprep.subr.mxu0 0.0
    %v543 = vand.u32 %v484, 4294901760
    %544 = vmatpush1.msra.mxu0 %v543
    %545 = vmatprep.subr.mxu0 0.0
    %v546 = vand.u32 %v485, 4294901760
    %547 = vmatpush1.msra.mxu0 %v546
    %548 = vmatprep.subr.mxu0 0.0
    %v549 = vand.u32 %v486, 4294901760
    %550 = vmatpush1.msra.mxu0 %v549
    %551 = vmatprep.subr.mxu0 0.0
    %v552 = vand.u32 %v487, 4294901760
    %553 = vmatpush1.msra.mxu0 %v552
    %554 = vmatprep.subr.mxu0 0.0
    %v555 = vand.u32 %v488, 4294901760
    %556 = vmatpush1.msra.mxu0 %v555
    %557 = vmatprep.subr.mxu0 0.0
    %v558 = vand.u32 %v489, 4294901760
    %559 = vmatpush1.msra.mxu0 %v558
    %560 = vmatprep.subr.mxu0 0.0
    %v561 = vand.u32 %v490, 4294901760
    %562 = vmatpush1.msra.mxu0 %v561
    %563 = vmatprep.subr.mxu0 0.0
    %564 = vmatpush1.msra.mxu0 0.0
    %565 = vmatprep.subr.mxu0 0.0
    %566 = vmatpush1.msra.mxu0 0.0
    %567 = vmatprep.subr.mxu0 0.0
    %568 = vmatpush1.msra.mxu0 0.0
    %569 = vmatprep.subr.mxu0 0.0
    %570 = vmatpush1.msra.mxu0 0.0
    %571 = vmatprep.subr.mxu0 0.0
    %572 = vmatpush1.msra.mxu0 0.0
    %573 = vmatprep.subr.mxu0 0.0
    %574 = vmatpush1.msra.mxu0 0.0
    %575 = vmatprep.subr.mxu0 0.0
    %576 = vmatpush1.msra.mxu0 0.0
    %577 = vmatprep.subr.mxu0 0.0
    %578 = vmatpush1.msra.mxu0 0.0
    %579 = vmatprep.subr.mxu0 0.0
    %580 = vmatpush1.msra.mxu0 0.0
    %581 = vmatprep.subr.mxu0 0.0
    %582 = vmatpush1.msra.mxu0 0.0
    %583 = vmatprep.subr.mxu0 0.0
    %584 = vmatpush1.msra.mxu0 0.0
    %585 = vmatprep.subr.mxu0 0.0
    %586 = vmatpush1.msra.mxu0 0.0
    %587 = vmatprep.subr.mxu0 0.0
    %588 = vmatpush1.msra.mxu0 0.0
    %589 = vmatprep.subr.mxu0 0.0
    %590 = vmatpush1.msra.mxu0 0.0
    %591 = vmatprep.subr.mxu0 0.0
    %592 = vmatpush1.msra.mxu0 0.0
    %593 = vmatprep.subr.mxu0 0.0
    %594 = vmatpush1.msra.mxu0 0.0
    %595 = vmatprep.subr.mxu0 0.0
    %596 = vmatpush1.msra.mxu0 0.0
    %597 = vmatprep.subr.mxu0 0.0
    %598 = vmatpush1.msra.mxu0 0.0
    %599 = vmatprep.subr.mxu0 0.0
    %600 = vmatpush1.msra.mxu0 0.0
    %601 = vmatprep.subr.mxu0 0.0
    %602 = vmatpush1.msra.mxu0 0.0
    %603 = vmatprep.subr.mxu0 0.0
    %604 = vmatpush1.msra.mxu0 0.0
    %605 = vmatprep.subr.mxu0 0.0
    %606 = vmatpush1.msra.mxu0 0.0
    %607 = vmatprep.subr.mxu0 0.0
    %608 = vmatpush1.msra.mxu0 0.0
    %609 = vmatprep.subr.mxu0 0.0
    %610 = vmatpush1.msra.mxu0 0.0
    %611 = vmatprep.mubr.f32.mxu0 0.0
    %v612 = vand.u32 %v528, 4294901760
    %v613 = vsub.f32 %v528, %v612
    %v614 = vand.u32 %v613, 4294901760
    %v615 = vsub.f32 %v613, %v614
    %v616 = vand.u32 %v615, 4294901760
    %617 = vmatmul.mubr.f32.gmra.mrb[0].mxu0 %v616
    %v618 = vpop.f32.mrb[0].mxu0
    %v619 = vadd.f32 0.0, %v618
    %v620 = vpop.f32.mrb[0].mxu0
    %621 = vmatprep.mubr.f32.mxu0 0.0
    %v622 = vand.u32 %v531, 4294901760
    %v623 = vsub.f32 %v531, %v622
    %v624 = vand.u32 %v623, 4294901760
    %v625 = vsub.f32 %v623, %v624
    %v626 = vand.u32 %v625, 4294901760
    %627 = vmatmul.mubr.f32.gmra.mrb[0].mxu0 %v626
    %v628 = vpop.f32.mrb[0].mxu0
    %v629 = vadd.f32 0.0, %v628
    %v630 = vpop.f32.mrb[0].mxu0
    %631 = vmatprep.mubr.f32.mxu0 0.0
    %v632 = vand.u32 %v534, 4294901760
    %v633 = vsub.f32 %v534, %v632
    %v634 = vand.u32 %v633, 4294901760
    %v635 = vsub.f32 %v633, %v634
    %v636 = vand.u32 %v635, 4294901760
    %637 = vmatmul.mubr.f32.gmra.mrb[0].mxu0 %v636
    %v638 = vpop.f32.mrb[0].mxu0
    %v639 = vadd.f32 0.0, %v638
    %v640 = vpop.f32.mrb[0].mxu0
    %641 = vmatprep.mubr.f32.mxu0 0.0
    %v642 = vand.u32 %v537, 4294901760
    %v643 = vsub.f32 %v537, %v642
    %v644 = vand.u32 %v643, 4294901760
    %v645 = vsub.f32 %v643, %v644
    %v646 = vand.u32 %v645, 4294901760
    %647 = vmatmul.mubr.f32.gmra.mrb[0].mxu0 %v646
    %v648 = vpop.f32.mrb[0].mxu0
    %v649 = vadd.f32 0.0, %v648
    %v650 = vpop.f32.mrb[0].mxu0
    %651 = vdwg.mxu0
    %652 = vmatprep.subr.mxu0 0.0
    %v653 = vand.u32 %v483, 4294901760
    %v654 = vsub.f32 %v483, %v653
    %v655 = vand.u32 %v654, 4294901760
    %v656 = vsub.f32 %v654, %v655
    %v657 = vand.u32 %v656, 4294901760
    %658 = vmatpush1.msra.mxu0 %v657
    %659 = vmatprep.subr.mxu0 0.0
    %v660 = vand.u32 %v484, 4294901760
    %v661 = vsub.f32 %v484, %v660
    %v662 = vand.u32 %v661, 4294901760
    %v663 = vsub.f32 %v661, %v662
    %v664 = vand.u32 %v663, 4294901760
    %665 = vmatpush1.msra.mxu0 %v664
    %666 = vmatprep.subr.mxu0 0.0
    %v667 = vand.u32 %v485, 4294901760
    %v668 = vsub.f32 %v485, %v667
    %v669 = vand.u32 %v668, 4294901760
    %v670 = vsub.f32 %v668, %v669
    %v671 = vand.u32 %v670, 4294901760
    %672 = vmatpush1.msra.mxu0 %v671
    %673 = vmatprep.subr.mxu0 0.0
    %v674 = vand.u32 %v486, 4294901760
    %v675 = vsub.f32 %v486, %v674
    %v676 = vand.u32 %v675, 4294901760
    %v677 = vsub.f32 %v675, %v676
    %v678 = vand.u32 %v677, 4294901760
    %679 = vmatpush1.msra.mxu0 %v678
    %680 = vmatprep.subr.mxu0 0.0
    %v681 = vand.u32 %v487, 4294901760
    %v682 = vsub.f32 %v487, %v681
    %v683 = vand.u32 %v682, 4294901760
    %v684 = vsub.f32 %v682, %v683
    %v685 = vand.u32 %v684, 4294901760
    %686 = vmatpush1.msra.mxu0 %v685
    %687 = vmatprep.subr.mxu0 0.0
    %v688 = vand.u32 %v488, 4294901760
    %v689 = vsub.f32 %v488, %v688
    %v690 = vand.u32 %v689, 4294901760
    %v691 = vsub.f32 %v689, %v690
    %v692 = vand.u32 %v691, 4294901760
    %693 = vmatpush1.msra.mxu0 %v692
    %694 = vmatprep.subr.mxu0 0.0
    %v695 = vand.u32 %v489, 4294901760
    %v696 = vsub.f32 %v489, %v695
    %v697 = vand.u32 %v696, 4294901760
    %v698 = vsub.f32 %v696, %v697
    %v699 = vand.u32 %v698, 4294901760
    %700 = vmatpush1.msra.mxu0 %v699
    %701 = vmatprep.subr.mxu0 0.0
    %v702 = vand.u32 %v490, 4294901760
    %v703 = vsub.f32 %v490, %v702
    %v704 = vand.u32 %v703, 4294901760
    %v705 = vsub.f32 %v703, %v704
    %v706 = vand.u32 %v705, 4294901760
    %707 = vmatpush1.msra.mxu0 %v706
    %708 = vmatprep.subr.mxu0 0.0
    %709 = vmatpush1.msra.mxu0 0.0
    %710 = vmatprep.subr.mxu0 0.0
    %711 = vmatpush1.msra.mxu0 0.0
    %712 = vmatprep.subr.mxu0 0.0
    %713 = vmatpush1.msra.mxu0 0.0
    %714 = vmatprep.subr.mxu0 0.0
    %715 = vmatpush1.msra.mxu0 0.0
    %716 = vmatprep.subr.mxu0 0.0
    %717 = vmatpush1.msra.mxu0 0.0
    %718 = vmatprep.subr.mxu0 0.0
    %719 = vmatpush1.msra.mxu0 0.0
    %720 = vmatprep.subr.mxu0 0.0
    %721 = vmatpush1.msra.mxu0 0.0
    %722 = vmatprep.subr.mxu0 0.0
    %723 = vmatpush1.msra.mxu0 0.0
    %724 = vmatprep.subr.mxu0 0.0
    %725 = vmatpush1.msra.mxu0 0.0
    %726 = vmatprep.subr.mxu0 0.0
    %727 = vmatpush1.msra.mxu0 0.0
    %728 = vmatprep.subr.mxu0 0.0
    %729 = vmatpush1.msra.mxu0 0.0
    %730 = vmatprep.subr.mxu0 0.0
    %731 = vmatpush1.msra.mxu0 0.0
    %732 = vmatprep.subr.mxu0 0.0
    %733 = vmatpush1.msra.mxu0 0.0
    %734 = vmatprep.subr.mxu0 0.0
    %735 = vmatpush1.msra.mxu0 0.0
    %736 = vmatprep.subr.mxu0 0.0
    %737 = vmatpush1.msra.mxu0 0.0
    %738 = vmatprep.subr.mxu0 0.0
    %739 = vmatpush1.msra.mxu0 0.0
    %740 = vmatprep.subr.mxu0 0.0
    %741 = vmatpush1.msra.mxu0 0.0
    %742 = vmatprep.subr.mxu0 0.0
    %743 = vmatpush1.msra.mxu0 0.0
    %744 = vmatprep.subr.mxu0 0.0
    %745 = vmatpush1.msra.mxu0 0.0
    %746 = vmatprep.subr.mxu0 0.0
    %747 = vmatpush1.msra.mxu0 0.0
    %748 = vmatprep.subr.mxu0 0.0
    %749 = vmatpush1.msra.mxu0 0.0
    %750 = vmatprep.subr.mxu0 0.0
    %751 = vmatpush1.msra.mxu0 0.0
    %752 = vmatprep.subr.mxu0 0.0
    %753 = vmatpush1.msra.mxu0 0.0
    %754 = vmatprep.subr.mxu0 0.0
    %755 = vmatpush1.msra.mxu0 0.0
    %756 = vmatprep.mubr.f32.mxu0 0.0
    %v757 = vand.u32 %v528, 4294901760
    %758 = vmatmul.mubr.f32.gmra.mrb[0].mxu0 %v757
    %v759 = vpop.f32.mrb[0].mxu0
    %v760 = vadd.f32 %v619, %v759
    %v761 = vpop.f32.mrb[0].mxu0
    %762 = vmatprep.mubr.f32.mxu0 0.0
    %v763 = vand.u32 %v531, 4294901760
    %764 = vmatmul.mubr.f32.gmra.mrb[0].mxu0 %v763
    %v765 = vpop.f32.mrb[0].mxu0
    %v766 = vadd.f32 %v629, %v765
    %v767 = vpop.f32.mrb[0].mxu0
    %768 = vmatprep.mubr.f32.mxu0 0.0
    %v769 = vand.u32 %v534, 4294901760
    %770 = vmatmul.mubr.f32.gmra.mrb[0].mxu0 %v769
    %v771 = vpop.f32.mrb[0].mxu0
    %v772 = vadd.f32 %v639, %v771
    %v773 = vpop.f32.mrb[0].mxu0
    %774 = vmatprep.mubr.f32.mxu0 0.0
    %v775 = vand.u32 %v537, 4294901760
    %776 = vmatmul.mubr.f32.gmra.mrb[0].mxu0 %v775
    %v777 = vpop.f32.mrb[0].mxu0
    %v778 = vadd.f32 %v649, %v777
    %v779 = vpop.f32.mrb[0].mxu0
    %780 = vdwg.mxu0
    %781 = vmatprep.subr.mxu0 0.0
    %v782 = vand.u32 %v483, 4294901760
    %v783 = vsub.f32 %v483, %v782
    %784 = vmatpush1.msra.mxu0 %v783
    %785 = vmatprep.subr.mxu0 0.0
    %v786 = vand.u32 %v484, 4294901760
    %v787 = vsub.f32 %v484, %v786
    %788 = vmatpush1.msra.mxu0 %v787
    %789 = vmatprep.subr.mxu0 0.0
    %v790 = vand.u32 %v485, 4294901760
    %v791 = vsub.f32 %v485, %v790
    %792 = vmatpush1.msra.mxu0 %v791
    %793 = vmatprep.subr.mxu0 0.0
    %v794 = vand.u32 %v486, 4294901760
    %v795 = vsub.f32 %v486, %v794
    %796 = vmatpush1.msra.mxu0 %v795
    %797 = vmatprep.subr.mxu0 0.0
    %v798 = vand.u32 %v487, 4294901760
    %v799 = vsub.f32 %v487, %v798
    %800 = vmatpush1.msra.mxu0 %v799
    %801 = vmatprep.subr.mxu0 0.0
    %v802 = vand.u32 %v488, 4294901760
    %v803 = vsub.f32 %v488, %v802
    %804 = vmatpush1.msra.mxu0 %v803
    %805 = vmatprep.subr.mxu0 0.0
    %v806 = vand.u32 %v489, 4294901760
    %v807 = vsub.f32 %v489, %v806
    %808 = vmatpush1.msra.mxu0 %v807
    %809 = vmatprep.subr.mxu0 0.0
    %v810 = vand.u32 %v490, 4294901760
    %v811 = vsub.f32 %v490, %v810
    %812 = vmatpush1.msra.mxu0 %v811
    %813 = vmatprep.subr.mxu0 0.0
    %814 = vmatpush1.msra.mxu0 0.0
    %815 = vmatprep.subr.mxu0 0.0
    %816 = vmatpush1.msra.mxu0 0.0
    %817 = vmatprep.subr.mxu0 0.0
    %818 = vmatpush1.msra.mxu0 0.0
    %819 = vmatprep.subr.mxu0 0.0
    %820 = vmatpush1.msra.mxu0 0.0
    %821 = vmatprep.subr.mxu0 0.0
    %822 = vmatpush1.msra.mxu0 0.0
    %823 = vmatprep.subr.mxu0 0.0
    %824 = vmatpush1.msra.mxu0 0.0
    %825 = vmatprep.subr.mxu0 0.0
    %826 = vmatpush1.msra.mxu0 0.0
    %827 = vmatprep.subr.mxu0 0.0
    %828 = vmatpush1.msra.mxu0 0.0
    %829 = vmatprep.subr.mxu0 0.0
    %830 = vmatpush1.msra.mxu0 0.0
    %831 = vmatprep.subr.mxu0 0.0
    %832 = vmatpush1.msra.mxu0 0.0
    %833 = vmatprep.subr.mxu0 0.0
    %834 = vmatpush1.msra.mxu0 0.0
    %835 = vmatprep.subr.mxu0 0.0
    %836 = vmatpush1.msra.mxu0 0.0
    %837 = vmatprep.subr.mxu0 0.0
    %838 = vmatpush1.msra.mxu0 0.0
    %839 = vmatprep.subr.mxu0 0.0
    %840 = vmatpush1.msra.mxu0 0.0
    %841 = vmatprep.subr.mxu0 0.0
    %842 = vmatpush1.msra.mxu0 0.0
    %843 = vmatprep.subr.mxu0 0.0
    %844 = vmatpush1.msra.mxu0 0.0
    %845 = vmatprep.subr.mxu0 0.0
    %846 = vmatpush1.msra.mxu0 0.0
    %847 = vmatprep.subr.mxu0 0.0
    %848 = vmatpush1.msra.mxu0 0.0
    %849 = vmatprep.subr.mxu0 0.0
    %850 = vmatpush1.msra.mxu0 0.0
    %851 = vmatprep.subr.mxu0 0.0
    %852 = vmatpush1.msra.mxu0 0.0
    %853 = vmatprep.subr.mxu0 0.0
    %854 = vmatpush1.msra.mxu0 0.0
    %855 = vmatprep.subr.mxu0 0.0
    %856 = vmatpush1.msra.mxu0 0.0
    %857 = vmatprep.subr.mxu0 0.0
    %858 = vmatpush1.msra.mxu0 0.0
    %859 = vmatprep.subr.mxu0 0.0
    %860 = vmatpush1.msra.mxu0 0.0
    %861 = vmatprep.mubr.f32.mxu0 0.0
    %v862 = vand.u32 %v528, 4294901760
    %v863 = vsub.f32 %v528, %v862
    %864 = vmatmul.mubr.f32.gmra.mrb[0].mxu0 %v863
    %v865 = vpop.f32.mrb[0].mxu0
    %v866 = vadd.f32 %v760, %v865
    %v867 = vpop.f32.mrb[0].mxu0
    %868 = vmatprep.mubr.f32.mxu0 0.0
    %v869 = vand.u32 %v531, 4294901760
    %v870 = vsub.f32 %v531, %v869
    %871 = vmatmul.mubr.f32.gmra.mrb[0].mxu0 %v870
    %v872 = vpop.f32.mrb[0].mxu0
    %v873 = vadd.f32 %v766, %v872
    %v874 = vpop.f32.mrb[0].mxu0
    %875 = vmatprep.mubr.f32.mxu0 0.0
    %v876 = vand.u32 %v534, 4294901760
    %v877 = vsub.f32 %v534, %v876
    %878 = vmatmul.mubr.f32.gmra.mrb[0].mxu0 %v877
    %v879 = vpop.f32.mrb[0].mxu0
    %v880 = vadd.f32 %v772, %v879
    %v881 = vpop.f32.mrb[0].mxu0
    %882 = vmatprep.mubr.f32.mxu0 0.0
    %v883 = vand.u32 %v537, 4294901760
    %v884 = vsub.f32 %v537, %v883
    %885 = vmatmul.mubr.f32.gmra.mrb[0].mxu0 %v884
    %v886 = vpop.f32.mrb[0].mxu0
    %v887 = vadd.f32 %v778, %v886
    %v888 = vpop.f32.mrb[0].mxu0
    %889 = vdwg.mxu0
    %890 = vmatprep.subr.mxu0 0.0
    %v891 = vand.u32 %v483, 4294901760
    %892 = vmatpush1.msra.mxu0 %v891
    %893 = vmatprep.subr.mxu0 0.0
    %v894 = vand.u32 %v484, 4294901760
    %895 = vmatpush1.msra.mxu0 %v894
    %896 = vmatprep.subr.mxu0 0.0
    %v897 = vand.u32 %v485, 4294901760
    %898 = vmatpush1.msra.mxu0 %v897
    %899 = vmatprep.subr.mxu0 0.0
    %v900 = vand.u32 %v486, 4294901760
    %901 = vmatpush1.msra.mxu0 %v900
    %902 = vmatprep.subr.mxu0 0.0
    %v903 = vand.u32 %v487, 4294901760
    %904 = vmatpush1.msra.mxu0 %v903
    %905 = vmatprep.subr.mxu0 0.0
    %v906 = vand.u32 %v488, 4294901760
    %907 = vmatpush1.msra.mxu0 %v906
    %908 = vmatprep.subr.mxu0 0.0
    %v909 = vand.u32 %v489, 4294901760
    %910 = vmatpush1.msra.mxu0 %v909
    %911 = vmatprep.subr.mxu0 0.0
    %v912 = vand.u32 %v490, 4294901760
    %913 = vmatpush1.msra.mxu0 %v912
    %914 = vmatprep.subr.mxu0 0.0
    %915 = vmatpush1.msra.mxu0 0.0
    %916 = vmatprep.subr.mxu0 0.0
    %917 = vmatpush1.msra.mxu0 0.0
    %918 = vmatprep.subr.mxu0 0.0
    %919 = vmatpush1.msra.mxu0 0.0
    %920 = vmatprep.subr.mxu0 0.0
    %921 = vmatpush1.msra.mxu0 0.0
    %922 = vmatprep.subr.mxu0 0.0
    %923 = vmatpush1.msra.mxu0 0.0
    %924 = vmatprep.subr.mxu0 0.0
    %925 = vmatpush1.msra.mxu0 0.0
    %926 = vmatprep.subr.mxu0 0.0
    %927 = vmatpush1.msra.mxu0 0.0
    %928 = vmatprep.subr.mxu0 0.0
    %929 = vmatpush1.msra.mxu0 0.0
    %930 = vmatprep.subr.mxu0 0.0
    %931 = vmatpush1.msra.mxu0 0.0
    %932 = vmatprep.subr.mxu0 0.0
    %933 = vmatpush1.msra.mxu0 0.0
    %934 = vmatprep.subr.mxu0 0.0
    %935 = vmatpush1.msra.mxu0 0.0
    %936 = vmatprep.subr.mxu0 0.0
    %937 = vmatpush1.msra.mxu0 0.0
    %938 = vmatprep.subr.mxu0 0.0
    %939 = vmatpush1.msra.mxu0 0.0
    %940 = vmatprep.subr.mxu0 0.0
    %941 = vmatpush1.msra.mxu0 0.0
    %942 = vmatprep.subr.mxu0 0.0
    %943 = vmatpush1.msra.mxu0 0.0
    %944 = vmatprep.subr.mxu0 0.0
    %945 = vmatpush1.msra.mxu0 0.0
    %946 = vmatprep.subr.mxu0 0.0
    %947 = vmatpush1.msra.mxu0 0.0
    %948 = vmatprep.subr.mxu0 0.0
    %949 = vmatpush1.msra.mxu0 0.0
    %950 = vmatprep.subr.mxu0 0.0
    %951 = vmatpush1.msra.mxu0 0.0
    %952 = vmatprep.subr.mxu0 0.0
    %953 = vmatpush1.msra.mxu0 0.0
    %954 = vmatprep.subr.mxu0 0.0
    %955 = vmatpush1.msra.mxu0 0.0
    %956 = vmatprep.subr.mxu0 0.0
    %957 = vmatpush1.msra.mxu0 0.0
    %958 = vmatprep.subr.mxu0 0.0
    %959 = vmatpush1.msra.mxu0 0.0
    %960 = vmatprep.subr.mxu0 0.0
    %961 = vmatpush1.msra.mxu0 0.0
    %962 = vmatprep.mubr.f32.mxu0 0.0
    %v963 = vand.u32 %v528, 4294901760
    %v964 = vsub.f32 %v528, %v963
    %v965 = vand.u32 %v964, 4294901760
    %966 = vmatmul.mubr.f32.gmra.mrb[0].mxu0 %v965
    %v967 = vpop.f32.mrb[0].mxu0
    %v968 = vadd.f32 %v866, %v967
    %v969 = vpop.f32.mrb[0].mxu0
    %970 = vmatprep.mubr.f32.mxu0 0.0
    %v971 = vand.u32 %v531, 4294901760
    %v972 = vsub.f32 %v531, %v971
    %v973 = vand.u32 %v972, 4294901760
    %974 = vmatmul.mubr.f32.gmra.mrb[0].mxu0 %v973
    %v975 = vpop.f32.mrb[0].mxu0
    %v976 = vadd.f32 %v873, %v975
    %v977 = vpop.f32.mrb[0].mxu0
    %978 = vmatprep.mubr.f32.mxu0 0.0
    %v979 = vand.u32 %v534, 4294901760
    %v980 = vsub.f32 %v534, %v979
    %v981 = vand.u32 %v980, 4294901760
    %982 = vmatmul.mubr.f32.gmra.mrb[0].mxu0 %v981
    %v983 = vpop.f32.mrb[0].mxu0
    %v984 = vadd.f32 %v880, %v983
    %v985 = vpop.f32.mrb[0].mxu0
    %986 = vmatprep.mubr.f32.mxu0 0.0
    %v987 = vand.u32 %v537, 4294901760
    %v988 = vsub.f32 %v537, %v987
    %v989 = vand.u32 %v988, 4294901760
    %990 = vmatmul.mubr.f32.gmra.mrb[0].mxu0 %v989
    %v991 = vpop.f32.mrb[0].mxu0
    %v992 = vadd.f32 %v887, %v991
    %v993 = vpop.f32.mrb[0].mxu0
    %994 = vdwg.mxu0
    %995 = vmatprep.subr.mxu0 0.0
    %v996 = vand.u32 %v483, 4294901760
    %v997 = vsub.f32 %v483, %v996
    %v998 = vand.u32 %v997, 4294901760
    %999 = vmatpush1.msra.mxu0 %v998
    %1000 = vmatprep.subr.mxu0 0.0
    %v1001 = vand.u32 %v484, 4294901760
    %v1002 = vsub.f32 %v484, %v1001
    %v1003 = vand.u32 %v1002, 4294901760
    %1004 = vmatpush1.msra.mxu0 %v1003
    %1005 = vmatprep.subr.mxu0 0.0
    %v1006 = vand.u32 %v485, 4294901760
    %v1007 = vsub.f32 %v485, %v1006
    %v1008 = vand.u32 %v1007, 4294901760
    %1009 = vmatpush1.msra.mxu0 %v1008
    %1010 = vmatprep.subr.mxu0 0.0
    %v1011 = vand.u32 %v486, 4294901760
    %v1012 = vsub.f32 %v486, %v1011
    %v1013 = vand.u32 %v1012, 4294901760
    %1014 = vmatpush1.msra.mxu0 %v1013
    %1015 = vmatprep.subr.mxu0 0.0
    %v1016 = vand.u32 %v487, 4294901760
    %v1017 = vsub.f32 %v487, %v1016
    %v1018 = vand.u32 %v1017, 4294901760
    %1019 = vmatpush1.msra.mxu0 %v1018
    %1020 = vmatprep.subr.mxu0 0.0
    %v1021 = vand.u32 %v488, 4294901760
    %v1022 = vsub.f32 %v488, %v1021
    %v1023 = vand.u32 %v1022, 4294901760
    %1024 = vmatpush1.msra.mxu0 %v1023
    %1025 = vmatprep.subr.mxu0 0.0
    %v1026 = vand.u32 %v489, 4294901760
    %v1027 = vsub.f32 %v489, %v1026
    %v1028 = vand.u32 %v1027, 4294901760
    %1029 = vmatpush1.msra.mxu0 %v1028
    %1030 = vmatprep.subr.mxu0 0.0
    %v1031 = vand.u32 %v490, 4294901760
    %v1032 = vsub.f32 %v490, %v1031
    %v1033 = vand.u32 %v1032, 4294901760
    %1034 = vmatpush1.msra.mxu0 %v1033
    %1035 = vmatprep.subr.mxu0 0.0
    %1036 = vmatpush1.msra.mxu0 0.0
    %1037 = vmatprep.subr.mxu0 0.0
    %1038 = vmatpush1.msra.mxu0 0.0
    %1039 = vmatprep.subr.mxu0 0.0
    %1040 = vmatpush1.msra.mxu0 0.0
    %1041 = vmatprep.subr.mxu0 0.0
    %1042 = vmatpush1.msra.mxu0 0.0
    %1043 = vmatprep.subr.mxu0 0.0
    %1044 = vmatpush1.msra.mxu0 0.0
    %1045 = vmatprep.subr.mxu0 0.0
    %1046 = vmatpush1.msra.mxu0 0.0
    %1047 = vmatprep.subr.mxu0 0.0
    %1048 = vmatpush1.msra.mxu0 0.0
    %1049 = vmatprep.subr.mxu0 0.0
    %1050 = vmatpush1.msra.mxu0 0.0
    %1051 = vmatprep.subr.mxu0 0.0
    %1052 = vmatpush1.msra.mxu0 0.0
    %1053 = vmatprep.subr.mxu0 0.0
    %1054 = vmatpush1.msra.mxu0 0.0
    %1055 = vmatprep.subr.mxu0 0.0
    %1056 = vmatpush1.msra.mxu0 0.0
    %1057 = vmatprep.subr.mxu0 0.0
    %1058 = vmatpush1.msra.mxu0 0.0
    %1059 = vmatprep.subr.mxu0 0.0
    %1060 = vmatpush1.msra.mxu0 0.0
    %1061 = vmatprep.subr.mxu0 0.0
    %1062 = vmatpush1.msra.mxu0 0.0
    %1063 = vmatprep.subr.mxu0 0.0
    %1064 = vmatpush1.msra.mxu0 0.0
    %1065 = vmatprep.subr.mxu0 0.0
    %1066 = vmatpush1.msra.mxu0 0.0
    %1067 = vmatprep.subr.mxu0 0.0
    %1068 = vmatpush1.msra.mxu0 0.0
    %1069 = vmatprep.subr.mxu0 0.0
    %1070 = vmatpush1.msra.mxu0 0.0
    %1071 = vmatprep.subr.mxu0 0.0
    %1072 = vmatpush1.msra.mxu0 0.0
    %1073 = vmatprep.subr.mxu0 0.0
    %1074 = vmatpush1.msra.mxu0 0.0
    %1075 = vmatprep.subr.mxu0 0.0
    %1076 = vmatpush1.msra.mxu0 0.0
    %1077 = vmatprep.subr.mxu0 0.0
    %1078 = vmatpush1.msra.mxu0 0.0
    %1079 = vmatprep.subr.mxu0 0.0
    %1080 = vmatpush1.msra.mxu0 0.0
    %1081 = vmatprep.subr.mxu0 0.0
    %1082 = vmatpush1.msra.mxu0 0.0
    %1083 = vmatprep.mubr.f32.mxu0 0.0
    %v1084 = vand.u32 %v528, 4294901760
    %1085 = vmatmul.mubr.f32.gmra.mrb[0].mxu0 %v1084
    %v1086 = vpop.f32.mrb[0].mxu0
    %v1087 = vadd.f32 %v968, %v1086
    %v1088 = vpop.f32.mrb[0].mxu0
    %1089 = vmatprep.mubr.f32.mxu0 0.0
    %v1090 = vand.u32 %v531, 4294901760
    %1091 = vmatmul.mubr.f32.gmra.mrb[0].mxu0 %v1090
    %v1092 = vpop.f32.mrb[0].mxu0
    %v1093 = vadd.f32 %v976, %v1092
    %v1094 = vpop.f32.mrb[0].mxu0
    %1095 = vmatprep.mubr.f32.mxu0 0.0
    %v1096 = vand.u32 %v534, 4294901760
    %1097 = vmatmul.mubr.f32.gmra.mrb[0].mxu0 %v1096
    %v1098 = vpop.f32.mrb[0].mxu0
    %v1099 = vadd.f32 %v984, %v1098
    %v1100 = vpop.f32.mrb[0].mxu0
    %1101 = vmatprep.mubr.f32.mxu0 0.0
    %v1102 = vand.u32 %v537, 4294901760
    %1103 = vmatmul.mubr.f32.gmra.mrb[0].mxu0 %v1102
    %v1104 = vpop.f32.mrb[0].mxu0
    %v1105 = vadd.f32 %v992, %v1104
    %v1106 = vpop.f32.mrb[0].mxu0
    %1107 = vdwg.mxu0
    %1108 = vmatprep.subr.mxu0 0.0
    %v1109 = vand.u32 %v483, 4294901760
    %1110 = vmatpush1.msra.mxu0 %v1109
    %1111 = vmatprep.subr.mxu0 0.0
    %v1112 = vand.u32 %v484, 4294901760
    %1113 = vmatpush1.msra.mxu0 %v1112
    %1114 = vmatprep.subr.mxu0 0.0
    %v1115 = vand.u32 %v485, 4294901760
    %1116 = vmatpush1.msra.mxu0 %v1115
    %1117 = vmatprep.subr.mxu0 0.0
    %v1118 = vand.u32 %v486, 4294901760
    %1119 = vmatpush1.msra.mxu0 %v1118
    %1120 = vmatprep.subr.mxu0 0.0
    %v1121 = vand.u32 %v487, 4294901760
    %1122 = vmatpush1.msra.mxu0 %v1121
    %1123 = vmatprep.subr.mxu0 0.0
    %v1124 = vand.u32 %v488, 4294901760
    %1125 = vmatpush1.msra.mxu0 %v1124
    %1126 = vmatprep.subr.mxu0 0.0
    %v1127 = vand.u32 %v489, 4294901760
    %1128 = vmatpush1.msra.mxu0 %v1127
    %1129 = vmatprep.subr.mxu0 0.0
    %v1130 = vand.u32 %v490, 4294901760
    %1131 = vmatpush1.msra.mxu0 %v1130
    %1132 = vmatprep.subr.mxu0 0.0
    %1133 = vmatpush1.msra.mxu0 0.0
    %1134 = vmatprep.subr.mxu0 0.0
    %1135 = vmatpush1.msra.mxu0 0.0
    %1136 = vmatprep.subr.mxu0 0.0
    %1137 = vmatpush1.msra.mxu0 0.0
    %1138 = vmatprep.subr.mxu0 0.0
    %1139 = vmatpush1.msra.mxu0 0.0
    %1140 = vmatprep.subr.mxu0 0.0
    %1141 = vmatpush1.msra.mxu0 0.0
    %1142 = vmatprep.subr.mxu0 0.0
    %1143 = vmatpush1.msra.mxu0 0.0
    %1144 = vmatprep.subr.mxu0 0.0
    %1145 = vmatpush1.msra.mxu0 0.0
    %1146 = vmatprep.subr.mxu0 0.0
    %1147 = vmatpush1.msra.mxu0 0.0
    %1148 = vmatprep.subr.mxu0 0.0
    %1149 = vmatpush1.msra.mxu0 0.0
    %1150 = vmatprep.subr.mxu0 0.0
    %1151 = vmatpush1.msra.mxu0 0.0
    %1152 = vmatprep.subr.mxu0 0.0
    %1153 = vmatpush1.msra.mxu0 0.0
    %1154 = vmatprep.subr.mxu0 0.0
    %1155 = vmatpush1.msra.mxu0 0.0
    %1156 = vmatprep.subr.mxu0 0.0
    %1157 = vmatpush1.msra.mxu0 0.0
    %1158 = vmatprep.subr.mxu0 0.0
    %1159 = vmatpush1.msra.mxu0 0.0
    %1160 = vmatprep.subr.mxu0 0.0
    %1161 = vmatpush1.msra.mxu0 0.0
    %1162 = vmatprep.subr.mxu0 0.0
    %1163 = vmatpush1.msra.mxu0 0.0
    %1164 = vmatprep.subr.mxu0 0.0
    %1165 = vmatpush1.msra.mxu0 0.0
    %1166 = vmatprep.subr.mxu0 0.0
    %1167 = vmatpush1.msra.mxu0 0.0
    %1168 = vmatprep.subr.mxu0 0.0
    %1169 = vmatpush1.msra.mxu0 0.0
    %1170 = vmatprep.subr.mxu0 0.0
    %1171 = vmatpush1.msra.mxu0 0.0
    %1172 = vmatprep.subr.mxu0 0.0
    %1173 = vmatpush1.msra.mxu0 0.0
    %1174 = vmatprep.subr.mxu0 0.0
    %1175 = vmatpush1.msra.mxu0 0.0
    %1176 = vmatprep.subr.mxu0 0.0
    %1177 = vmatpush1.msra.mxu0 0.0
    %1178 = vmatprep.subr.mxu0 0.0
    %1179 = vmatpush1.msra.mxu0 0.0
    %1180 = vmatprep.mubr.f32.mxu0 0.0
    %v1181 = vand.u32 %v528, 4294901760
    %1182 = vmatmul.mubr.f32.gmra.mrb[0].mxu0 %v1181
    %v1183 = vpop.f32.mrb[0].mxu0
    %v1184 = vadd.f32 %v1087, %v1183
    %v1185 = vpop.f32.mrb[0].mxu0
    %1186 = vmatprep.mubr.f32.mxu0 0.0
    %v1187 = vand.u32 %v531, 4294901760
    %1188 = vmatmul.mubr.f32.gmra.mrb[0].mxu0 %v1187
    %v1189 = vpop.f32.mrb[0].mxu0
    %v1190 = vadd.f32 %v1093, %v1189
    %v1191 = vpop.f32.mrb[0].mxu0
    %1192 = vmatprep.mubr.f32.mxu0 0.0
    %v1193 = vand.u32 %v534, 4294901760
    %1194 = vmatmul.mubr.f32.gmra.mrb[0].mxu0 %v1193
    %v1195 = vpop.f32.mrb[0].mxu0
    %v1196 = vadd.f32 %v1099, %v1195
    %v1197 = vpop.f32.mrb[0].mxu0
    %1198 = vmatprep.mubr.f32.mxu0 0.0
    %v1199 = vand.u32 %v537, 4294901760
    %1200 = vmatmul.mubr.f32.gmra.mrb[0].mxu0 %v1199
    %v1201 = vpop.f32.mrb[0].mxu0
    %v1202 = vadd.f32 %v1105, %v1201
    %v1203 = vpop.f32.mrb[0].mxu0
    %1204 = vdwg.mxu0
    %v1205 = vadd.f32 %v491, %v1184
    %v1206 = vadd.f32 %v492, %v1190
    %v1207 = vadd.f32 %v493, %v1196
    %v1208 = vadd.f32 %v494, %v1202
    %1209 = vst.msk [vmem:[#allocation2] sm:$0xff] %vm117, %v1205
    %1210 = vst.msk [vmem:[#allocation2 + $0x8] sm:$0xff] %vm117, %v1206
    %1211 = vst.msk [vmem:[#allocation2 + $0x10] sm:$0xff] %vm117, %v1207
    %1212 = vst.msk [vmem:[#allocation2 + $0x18] sm:$0xff] %vm117, %v1208
    %s1213 = scalar_lea.vmem [#allocation2], 32
    %v1214 = vld [vmem:[%s1213] sm:$0xff]
    %v1215 = vld [vmem:[%s1213 + $0x8] sm:$0xff]
    %v1216 = vld [vmem:[%s1213 + $0x10] sm:$0xff]
    %v1217 = vld [vmem:[%s1213 + $0x18] sm:$0xff]
    %v1218 = vsub.f32 %v483, %v453
    %v1219 = vsub.f32 %v484, %v456
    %v1220 = vsub.f32 %v485, %v461
    %v1221 = vsub.f32 %v486, %v464
    %v1222 = vsub.f32 %v487, %v469
    %v1223 = vsub.f32 %v488, %v472
    %v1224 = vsub.f32 %v489, %v477
    %v1225 = vsub.f32 %v490, %v480
    %1226 = vmatprep.subr.mxu0 0.0
    %v1227 = vand.u32 %v1218, 4294901760
    %1228 = vmatpush1.msra.mxu0 %v1227
    %1229 = vmatprep.subr.mxu0 0.0
    %v1230 = vand.u32 %v1219, 4294901760
    %1231 = vmatpush1.msra.mxu0 %v1230
    %1232 = vmatprep.subr.mxu0 0.0
    %v1233 = vand.u32 %v1220, 4294901760
    %1234 = vmatpush1.msra.mxu0 %v1233
    %1235 = vmatprep.subr.mxu0 0.0
    %v1236 = vand.u32 %v1221, 4294901760
    %1237 = vmatpush1.msra.mxu0 %v1236
    %1238 = vmatprep.subr.mxu0 0.0
    %v1239 = vand.u32 %v1222, 4294901760
    %1240 = vmatpush1.msra.mxu0 %v1239
    %1241 = vmatprep.subr.mxu0 0.0
    %v1242 = vand.u32 %v1223, 4294901760
    %1243 = vmatpush1.msra.mxu0 %v1242
    %1244 = vmatprep.subr.mxu0 0.0
    %v1245 = vand.u32 %v1224, 4294901760
    %1246 = vmatpush1.msra.mxu0 %v1245
    %1247 = vmatprep.subr.mxu0 0.0
    %v1248 = vand.u32 %v1225, 4294901760
    %1249 = vmatpush1.msra.mxu0 %v1248
    %1250 = vmatprep.subr.mxu0 0.0
    %1251 = vmatpush1.msra.mxu0 0.0
    %1252 = vmatprep.subr.mxu0 0.0
    %1253 = vmatpush1.msra.mxu0 0.0
    %1254 = vmatprep.subr.mxu0 0.0
    %1255 = vmatpush1.msra.mxu0 0.0
    %1256 = vmatprep.subr.mxu0 0.0
    %1257 = vmatpush1.msra.mxu0 0.0
    %1258 = vmatprep.subr.mxu0 0.0
    %1259 = vmatpush1.msra.mxu0 0.0
    %1260 = vmatprep.subr.mxu0 0.0
    %1261 = vmatpush1.msra.mxu0 0.0
    %1262 = vmatprep.subr.mxu0 0.0
    %1263 = vmatpush1.msra.mxu0 0.0
    %1264 = vmatprep.subr.mxu0 0.0
    %1265 = vmatpush1.msra.mxu0 0.0
    %1266 = vmatprep.subr.mxu0 0.0
    %1267 = vmatpush1.msra.mxu0 0.0
    %1268 = vmatprep.subr.mxu0 0.0
    %1269 = vmatpush1.msra.mxu0 0.0
    %1270 = vmatprep.subr.mxu0 0.0
    %1271 = vmatpush1.msra.mxu0 0.0
    %1272 = vmatprep.subr.mxu0 0.0
    %1273 = vmatpush1.msra.mxu0 0.0
    %1274 = vmatprep.subr.mxu0 0.0
    %1275 = vmatpush1.msra.mxu0 0.0
    %1276 = vmatprep.subr.mxu0 0.0
    %1277 = vmatpush1.msra.mxu0 0.0
    %1278 = vmatprep.subr.mxu0 0.0
    %1279 = vmatpush1.msra.mxu0 0.0
    %1280 = vmatprep.subr.mxu0 0.0
    %1281 = vmatpush1.msra.mxu0 0.0
    %1282 = vmatprep.subr.mxu0 0.0
    %1283 = vmatpush1.msra.mxu0 0.0
    %1284 = vmatprep.subr.mxu0 0.0
    %1285 = vmatpush1.msra.mxu0 0.0
    %1286 = vmatprep.subr.mxu0 0.0
    %1287 = vmatpush1.msra.mxu0 0.0
    %1288 = vmatprep.subr.mxu0 0.0
    %1289 = vmatpush1.msra.mxu0 0.0
    %1290 = vmatprep.subr.mxu0 0.0
    %1291 = vmatpush1.msra.mxu0 0.0
    %1292 = vmatprep.subr.mxu0 0.0
    %1293 = vmatpush1.msra.mxu0 0.0
    %1294 = vmatprep.subr.mxu0 0.0
    %1295 = vmatpush1.msra.mxu0 0.0
    %1296 = vmatprep.subr.mxu0 0.0
    %1297 = vmatpush1.msra.mxu0 0.0
    %1298 = vmatprep.mubr.f32.mxu0 0.0
    %v1299 = vand.u32 %v528, 4294901760
    %v1300 = vsub.f32 %v528, %v1299
    %v1301 = vand.u32 %v1300, 4294901760
    %v1302 = vsub.f32 %v1300, %v1301
    %v1303 = vand.u32 %v1302, 4294901760
    %1304 = vmatmul.mubr.f32.gmra.mrb[0].mxu0 %v1303
    %v1305 = vpop.f32.mrb[0].mxu0
    %v1306 = vadd.f32 0.0, %v1305
    %v1307 = vpop.f32.mrb[0].mxu0
    %1308 = vmatprep.mubr.f32.mxu0 0.0
    %v1309 = vand.u32 %v531, 4294901760
    %v1310 = vsub.f32 %v531, %v1309
    %v1311 = vand.u32 %v1310, 4294901760
    %v1312 = vsub.f32 %v1310, %v1311
    %v1313 = vand.u32 %v1312, 4294901760
    %1314 = vmatmul.mubr.f32.gmra.mrb[0].mxu0 %v1313
    %v1315 = vpop.f32.mrb[0].mxu0
    %v1316 = vadd.f32 0.0, %v1315
    %v1317 = vpop.f32.mrb[0].mxu0
    %1318 = vmatprep.mubr.f32.mxu0 0.0
    %v1319 = vand.u32 %v534, 4294901760
    %v1320 = vsub.f32 %v534, %v1319
    %v1321 = vand.u32 %v1320, 4294901760
    %v1322 = vsub.f32 %v1320, %v1321
    %v1323 = vand.u32 %v1322, 4294901760
    %1324 = vmatmul.mubr.f32.gmra.mrb[0].mxu0 %v1323
    %v1325 = vpop.f32.mrb[0].mxu0
    %v1326 = vadd.f32 0.0, %v1325
    %v1327 = vpop.f32.mrb[0].mxu0
    %1328 = vmatprep.mubr.f32.mxu0 0.0
    %v1329 = vand.u32 %v537, 4294901760
    %v1330 = vsub.f32 %v537, %v1329
    %v1331 = vand.u32 %v1330, 4294901760
    %v1332 = vsub.f32 %v1330, %v1331
    %v1333 = vand.u32 %v1332, 4294901760
    %1334 = vmatmul.mubr.f32.gmra.mrb[0].mxu0 %v1333
    %v1335 = vpop.f32.mrb[0].mxu0
    %v1336 = vadd.f32 0.0, %v1335
    %v1337 = vpop.f32.mrb[0].mxu0
    %1338 = vdwg.mxu0
    %1339 = vmatprep.subr.mxu0 0.0
    %v1340 = vand.u32 %v1218, 4294901760
    %v1341 = vsub.f32 %v1218, %v1340
    %v1342 = vand.u32 %v1341, 4294901760
    %v1343 = vsub.f32 %v1341, %v1342
    %v1344 = vand.u32 %v1343, 4294901760
    %1345 = vmatpush1.msra.mxu0 %v1344
    %1346 = vmatprep.subr.mxu0 0.0
    %v1347 = vand.u32 %v1219, 4294901760
    %v1348 = vsub.f32 %v1219, %v1347
    %v1349 = vand.u32 %v1348, 4294901760
    %v1350 = vsub.f32 %v1348, %v1349
    %v1351 = vand.u32 %v1350, 4294901760
    %1352 = vmatpush1.msra.mxu0 %v1351
    %1353 = vmatprep.subr.mxu0 0.0
    %v1354 = vand.u32 %v1220, 4294901760
    %v1355 = vsub.f32 %v1220, %v1354
    %v1356 = vand.u32 %v1355, 4294901760
    %v1357 = vsub.f32 %v1355, %v1356
    %v1358 = vand.u32 %v1357, 4294901760
    %1359 = vmatpush1.msra.mxu0 %v1358
    %1360 = vmatprep.subr.mxu0 0.0
    %v1361 = vand.u32 %v1221, 4294901760
    %v1362 = vsub.f32 %v1221, %v1361
    %v1363 = vand.u32 %v1362, 4294901760
    %v1364 = vsub.f32 %v1362, %v1363
    %v1365 = vand.u32 %v1364, 4294901760
    %1366 = vmatpush1.msra.mxu0 %v1365
    %1367 = vmatprep.subr.mxu0 0.0
    %v1368 = vand.u32 %v1222, 4294901760
    %v1369 = vsub.f32 %v1222, %v1368
    %v1370 = vand.u32 %v1369, 4294901760
    %v1371 = vsub.f32 %v1369, %v1370
    %v1372 = vand.u32 %v1371, 4294901760
    %1373 = vmatpush1.msra.mxu0 %v1372
    %1374 = vmatprep.subr.mxu0 0.0
    %v1375 = vand.u32 %v1223, 4294901760
    %v1376 = vsub.f32 %v1223, %v1375
    %v1377 = vand.u32 %v1376, 4294901760
    %v1378 = vsub.f32 %v1376, %v1377
    %v1379 = vand.u32 %v1378, 4294901760
    %1380 = vmatpush1.msra.mxu0 %v1379
    %1381 = vmatprep.subr.mxu0 0.0
    %v1382 = vand.u32 %v1224, 4294901760
    %v1383 = vsub.f32 %v1224, %v1382
    %v1384 = vand.u32 %v1383, 4294901760
    %v1385 = vsub.f32 %v1383, %v1384
    %v1386 = vand.u32 %v1385, 4294901760
    %1387 = vmatpush1.msra.mxu0 %v1386
    %1388 = vmatprep.subr.mxu0 0.0
    %v1389 = vand.u32 %v1225, 4294901760
    %v1390 = vsub.f32 %v1225, %v1389
    %v1391 = vand.u32 %v1390, 4294901760
    %v1392 = vsub.f32 %v1390, %v1391
    %v1393 = vand.u32 %v1392, 4294901760
    %1394 = vmatpush1.msra.mxu0 %v1393
    %1395 = vmatprep.subr.mxu0 0.0
    %1396 = vmatpush1.msra.mxu0 0.0
    %1397 = vmatprep.subr.mxu0 0.0
    %1398 = vmatpush1.msra.mxu0 0.0
    %1399 = vmatprep.subr.mxu0 0.0
    %1400 = vmatpush1.msra.mxu0 0.0
    %1401 = vmatprep.subr.mxu0 0.0
    %1402 = vmatpush1.msra.mxu0 0.0
    %1403 = vmatprep.subr.mxu0 0.0
    %1404 = vmatpush1.msra.mxu0 0.0
    %1405 = vmatprep.subr.mxu0 0.0
    %1406 = vmatpush1.msra.mxu0 0.0
    %1407 = vmatprep.subr.mxu0 0.0
    %1408 = vmatpush1.msra.mxu0 0.0
    %1409 = vmatprep.subr.mxu0 0.0
    %1410 = vmatpush1.msra.mxu0 0.0
    %1411 = vmatprep.subr.mxu0 0.0
    %1412 = vmatpush1.msra.mxu0 0.0
    %1413 = vmatprep.subr.mxu0 0.0
    %1414 = vmatpush1.msra.mxu0 0.0
    %1415 = vmatprep.subr.mxu0 0.0
    %1416 = vmatpush1.msra.mxu0 0.0
    %1417 = vmatprep.subr.mxu0 0.0
    %1418 = vmatpush1.msra.mxu0 0.0
    %1419 = vmatprep.subr.mxu0 0.0
    %1420 = vmatpush1.msra.mxu0 0.0
    %1421 = vmatprep.subr.mxu0 0.0
    %1422 = vmatpush1.msra.mxu0 0.0
    %1423 = vmatprep.subr.mxu0 0.0
    %1424 = vmatpush1.msra.mxu0 0.0
    %1425 = vmatprep.subr.mxu0 0.0
    %1426 = vmatpush1.msra.mxu0 0.0
    %1427 = vmatprep.subr.mxu0 0.0
    %1428 = vmatpush1.msra.mxu0 0.0
    %1429 = vmatprep.subr.mxu0 0.0
    %1430 = vmatpush1.msra.mxu0 0.0
    %1431 = vmatprep.subr.mxu0 0.0
    %1432 = vmatpush1.msra.mxu0 0.0
    %1433 = vmatprep.subr.mxu0 0.0
    %1434 = vmatpush1.msra.mxu0 0.0
    %1435 = vmatprep.subr.mxu0 0.0
    %1436 = vmatpush1.msra.mxu0 0.0
    %1437 = vmatprep.subr.mxu0 0.0
    %1438 = vmatpush1.msra.mxu0 0.0
    %1439 = vmatprep.subr.mxu0 0.0
    %1440 = vmatpush1.msra.mxu0 0.0
    %1441 = vmatprep.subr.mxu0 0.0
    %1442 = vmatpush1.msra.mxu0 0.0
    %1443 = vmatprep.mubr.f32.mxu0 0.0
    %v1444 = vand.u32 %v528, 4294901760
    %1445 = vmatmul.mubr.f32.gmra.mrb[0].mxu0 %v1444
    %v1446 = vpop.f32.mrb[0].mxu0
    %v1447 = vadd.f32 %v1306, %v1446
    %v1448 = vpop.f32.mrb[0].mxu0
    %1449 = vmatprep.mubr.f32.mxu0 0.0
    %v1450 = vand.u32 %v531, 4294901760
    %1451 = vmatmul.mubr.f32.gmra.mrb[0].mxu0 %v1450
    %v1452 = vpop.f32.mrb[0].mxu0
    %v1453 = vadd.f32 %v1316, %v1452
    %v1454 = vpop.f32.mrb[0].mxu0
    %1455 = vmatprep.mubr.f32.mxu0 0.0
    %v1456 = vand.u32 %v534, 4294901760
    %1457 = vmatmul.mubr.f32.gmra.mrb[0].mxu0 %v1456
    %v1458 = vpop.f32.mrb[0].mxu0
    %v1459 = vadd.f32 %v1326, %v1458
    %v1460 = vpop.f32.mrb[0].mxu0
    %1461 = vmatprep.mubr.f32.mxu0 0.0
    %v1462 = vand.u32 %v537, 4294901760
    %1463 = vmatmul.mubr.f32.gmra.mrb[0].mxu0 %v1462
    %v1464 = vpop.f32.mrb[0].mxu0
    %v1465 = vadd.f32 %v1336, %v1464
    %v1466 = vpop.f32.mrb[0].mxu0
    %1467 = vdwg.mxu0
    %1468 = vmatprep.subr.mxu0 0.0
    %v1469 = vand.u32 %v1218, 4294901760
    %v1470 = vsub.f32 %v1218, %v1469
    %1471 = vmatpush1.msra.mxu0 %v1470
    %1472 = vmatprep.subr.mxu0 0.0
    %v1473 = vand.u32 %v1219, 4294901760
    %v1474 = vsub.f32 %v1219, %v1473
    %1475 = vmatpush1.msra.mxu0 %v1474
    %1476 = vmatprep.subr.mxu0 0.0
    %v1477 = vand.u32 %v1220, 4294901760
    %v1478 = vsub.f32 %v1220, %v1477
    %1479 = vmatpush1.msra.mxu0 %v1478
    %1480 = vmatprep.subr.mxu0 0.0
    %v1481 = vand.u32 %v1221, 4294901760
    %v1482 = vsub.f32 %v1221, %v1481
    %1483 = vmatpush1.msra.mxu0 %v1482
    %1484 = vmatprep.subr.mxu0 0.0
    %v1485 = vand.u32 %v1222, 4294901760
    %v1486 = vsub.f32 %v1222, %v1485
    %1487 = vmatpush1.msra.mxu0 %v1486
    %1488 = vmatprep.subr.mxu0 0.0
    %v1489 = vand.u32 %v1223, 4294901760
    %v1490 = vsub.f32 %v1223, %v1489
    %1491 = vmatpush1.msra.mxu0 %v1490
    %1492 = vmatprep.subr.mxu0 0.0
    %v1493 = vand.u32 %v1224, 4294901760
    %v1494 = vsub.f32 %v1224, %v1493
    %1495 = vmatpush1.msra.mxu0 %v1494
    %1496 = vmatprep.subr.mxu0 0.0
    %v1497 = vand.u32 %v1225, 4294901760
    %v1498 = vsub.f32 %v1225, %v1497
    %1499 = vmatpush1.msra.mxu0 %v1498
    %1500 = vmatprep.subr.mxu0 0.0
    %1501 = vmatpush1.msra.mxu0 0.0
    %1502 = vmatprep.subr.mxu0 0.0
    %1503 = vmatpush1.msra.mxu0 0.0
    %1504 = vmatprep.subr.mxu0 0.0
    %1505 = vmatpush1.msra.mxu0 0.0
    %1506 = vmatprep.subr.mxu0 0.0
    %1507 = vmatpush1.msra.mxu0 0.0
    %1508 = vmatprep.subr.mxu0 0.0
    %1509 = vmatpush1.msra.mxu0 0.0
    %1510 = vmatprep.subr.mxu0 0.0
    %1511 = vmatpush1.msra.mxu0 0.0
    %1512 = vmatprep.subr.mxu0 0.0
    %1513 = vmatpush1.msra.mxu0 0.0
    %1514 = vmatprep.subr.mxu0 0.0
    %1515 = vmatpush1.msra.mxu0 0.0
    %1516 = vmatprep.subr.mxu0 0.0
    %1517 = vmatpush1.msra.mxu0 0.0
    %1518 = vmatprep.subr.mxu0 0.0
    %1519 = vmatpush1.msra.mxu0 0.0
    %1520 = vmatprep.subr.mxu0 0.0
    %1521 = vmatpush1.msra.mxu0 0.0
    %1522 = vmatprep.subr.mxu0 0.0
    %1523 = vmatpush1.msra.mxu0 0.0
    %1524 = vmatprep.subr.mxu0 0.0
    %1525 = vmatpush1.msra.mxu0 0.0
    %1526 = vmatprep.subr.mxu0 0.0
    %1527 = vmatpush1.msra.mxu0 0.0
    %1528 = vmatprep.subr.mxu0 0.0
    %1529 = vmatpush1.msra.mxu0 0.0
    %1530 = vmatprep.subr.mxu0 0.0
    %1531 = vmatpush1.msra.mxu0 0.0
    %1532 = vmatprep.subr.mxu0 0.0
    %1533 = vmatpush1.msra.mxu0 0.0
    %1534 = vmatprep.subr.mxu0 0.0
    %1535 = vmatpush1.msra.mxu0 0.0
    %1536 = vmatprep.subr.mxu0 0.0
    %1537 = vmatpush1.msra.mxu0 0.0
    %1538 = vmatprep.subr.mxu0 0.0
    %1539 = vmatpush1.msra.mxu0 0.0
    %1540 = vmatprep.subr.mxu0 0.0
    %1541 = vmatpush1.msra.mxu0 0.0
    %1542 = vmatprep.subr.mxu0 0.0
    %1543 = vmatpush1.msra.mxu0 0.0
    %1544 = vmatprep.subr.mxu0 0.0
    %1545 = vmatpush1.msra.mxu0 0.0
    %1546 = vmatprep.subr.mxu0 0.0
    %1547 = vmatpush1.msra.mxu0 0.0
    %1548 = vmatprep.mubr.f32.mxu0 0.0
    %v1549 = vand.u32 %v528, 4294901760
    %v1550 = vsub.f32 %v528, %v1549
    %1551 = vmatmul.mubr.f32.gmra.mrb[0].mxu0 %v1550
    %v1552 = vpop.f32.mrb[0].mxu0
    %v1553 = vadd.f32 %v1447, %v1552
    %v1554 = vpop.f32.mrb[0].mxu0
    %1555 = vmatprep.mubr.f32.mxu0 0.0
    %v1556 = vand.u32 %v531, 4294901760
    %v1557 = vsub.f32 %v531, %v1556
    %1558 = vmatmul.mubr.f32.gmra.mrb[0].mxu0 %v1557
    %v1559 = vpop.f32.mrb[0].mxu0
    %v1560 = vadd.f32 %v1453, %v1559
    %v1561 = vpop.f32.mrb[0].mxu0
    %1562 = vmatprep.mubr.f32.mxu0 0.0
    %v1563 = vand.u32 %v534, 4294901760
    %v1564 = vsub.f32 %v534, %v1563
    %1565 = vmatmul.mubr.f32.gmra.mrb[0].mxu0 %v1564
    %v1566 = vpop.f32.mrb[0].mxu0
    %v1567 = vadd.f32 %v1459, %v1566
    %v1568 = vpop.f32.mrb[0].mxu0
    %1569 = vmatprep.mubr.f32.mxu0 0.0
    %v1570 = vand.u32 %v537, 4294901760
    %v1571 = vsub.f32 %v537, %v1570
    %1572 = vmatmul.mubr.f32.gmra.mrb[0].mxu0 %v1571
    %v1573 = vpop.f32.mrb[0].mxu0
    %v1574 = vadd.f32 %v1465, %v1573
    %v1575 = vpop.f32.mrb[0].mxu0
    %1576 = vdwg.mxu0
    %1577 = vmatprep.subr.mxu0 0.0
    %v1578 = vand.u32 %v1218, 4294901760
    %1579 = vmatpush1.msra.mxu0 %v1578
    %1580 = vmatprep.subr.mxu0 0.0
    %v1581 = vand.u32 %v1219, 4294901760
    %1582 = vmatpush1.msra.mxu0 %v1581
    %1583 = vmatprep.subr.mxu0 0.0
    %v1584 = vand.u32 %v1220, 4294901760
    %1585 = vmatpush1.msra.mxu0 %v1584
    %1586 = vmatprep.subr.mxu0 0.0
    %v1587 = vand.u32 %v1221, 4294901760
    %1588 = vmatpush1.msra.mxu0 %v1587
    %1589 = vmatprep.subr.mxu0 0.0
    %v1590 = vand.u32 %v1222, 4294901760
    %1591 = vmatpush1.msra.mxu0 %v1590
    %1592 = vmatprep.subr.mxu0 0.0
    %v1593 = vand.u32 %v1223, 4294901760
    %1594 = vmatpush1.msra.mxu0 %v1593
    %1595 = vmatprep.subr.mxu0 0.0
    %v1596 = vand.u32 %v1224, 4294901760
    %1597 = vmatpush1.msra.mxu0 %v1596
    %1598 = vmatprep.subr.mxu0 0.0
    %v1599 = vand.u32 %v1225, 4294901760
    %1600 = vmatpush1.msra.mxu0 %v1599
    %1601 = vmatprep.subr.mxu0 0.0
    %1602 = vmatpush1.msra.mxu0 0.0
    %1603 = vmatprep.subr.mxu0 0.0
    %1604 = vmatpush1.msra.mxu0 0.0
    %1605 = vmatprep.subr.mxu0 0.0
    %1606 = vmatpush1.msra.mxu0 0.0
    %1607 = vmatprep.subr.mxu0 0.0
    %1608 = vmatpush1.msra.mxu0 0.0
    %1609 = vmatprep.subr.mxu0 0.0
    %1610 = vmatpush1.msra.mxu0 0.0
    %1611 = vmatprep.subr.mxu0 0.0
    %1612 = vmatpush1.msra.mxu0 0.0
    %1613 = vmatprep.subr.mxu0 0.0
    %1614 = vmatpush1.msra.mxu0 0.0
    %1615 = vmatprep.subr.mxu0 0.0
    %1616 = vmatpush1.msra.mxu0 0.0
    %1617 = vmatprep.subr.mxu0 0.0
    %1618 = vmatpush1.msra.mxu0 0.0
    %1619 = vmatprep.subr.mxu0 0.0
    %1620 = vmatpush1.msra.mxu0 0.0
    %1621 = vmatprep.subr.mxu0 0.0
    %1622 = vmatpush1.msra.mxu0 0.0
    %1623 = vmatprep.subr.mxu0 0.0
    %1624 = vmatpush1.msra.mxu0 0.0
    %1625 = vmatprep.subr.mxu0 0.0
    %1626 = vmatpush1.msra.mxu0 0.0
    %1627 = vmatprep.subr.mxu0 0.0
    %1628 = vmatpush1.msra.mxu0 0.0
    %1629 = vmatprep.subr.mxu0 0.0
    %1630 = vmatpush1.msra.mxu0 0.0
    %1631 = vmatprep.subr.mxu0 0.0
    %1632 = vmatpush1.msra.mxu0 0.0
    %1633 = vmatprep.subr.mxu0 0.0
    %1634 = vmatpush1.msra.mxu0 0.0
    %1635 = vmatprep.subr.mxu0 0.0
    %1636 = vmatpush1.msra.mxu0 0.0
    %1637 = vmatprep.subr.mxu0 0.0
    %1638 = vmatpush1.msra.mxu0 0.0
    %1639 = vmatprep.subr.mxu0 0.0
    %1640 = vmatpush1.msra.mxu0 0.0
    %1641 = vmatprep.subr.mxu0 0.0
    %1642 = vmatpush1.msra.mxu0 0.0
    %1643 = vmatprep.subr.mxu0 0.0
    %1644 = vmatpush1.msra.mxu0 0.0
    %1645 = vmatprep.subr.mxu0 0.0
    %1646 = vmatpush1.msra.mxu0 0.0
    %1647 = vmatprep.subr.mxu0 0.0
    %1648 = vmatpush1.msra.mxu0 0.0
    %1649 = vmatprep.mubr.f32.mxu0 0.0
    %v1650 = vand.u32 %v528, 4294901760
    %v1651 = vsub.f32 %v528, %v1650
    %v1652 = vand.u32 %v1651, 4294901760
    %1653 = vmatmul.mubr.f32.gmra.mrb[0].mxu0 %v1652
    %v1654 = vpop.f32.mrb[0].mxu0
    %v1655 = vadd.f32 %v1553, %v1654
    %v1656 = vpop.f32.mrb[0].mxu0
    %1657 = vmatprep.mubr.f32.mxu0 0.0
    %v1658 = vand.u32 %v531, 4294901760
    %v1659 = vsub.f32 %v531, %v1658
    %v1660 = vand.u32 %v1659, 4294901760
    %1661 = vmatmul.mubr.f32.gmra.mrb[0].mxu0 %v1660
    %v1662 = vpop.f32.mrb[0].mxu0
    %v1663 = vadd.f32 %v1560, %v1662
    %v1664 = vpop.f32.mrb[0].mxu0
    %1665 = vmatprep.mubr.f32.mxu0 0.0
    %v1666 = vand.u32 %v534, 4294901760
    %v1667 = vsub.f32 %v534, %v1666
    %v1668 = vand.u32 %v1667, 4294901760
    %1669 = vmatmul.mubr.f32.gmra.mrb[0].mxu0 %v1668
    %v1670 = vpop.f32.mrb[0].mxu0
    %v1671 = vadd.f32 %v1567, %v1670
    %v1672 = vpop.f32.mrb[0].mxu0
    %1673 = vmatprep.mubr.f32.mxu0 0.0
    %v1674 = vand.u32 %v537, 4294901760
    %v1675 = vsub.f32 %v537, %v1674
    %v1676 = vand.u32 %v1675, 4294901760
    %1677 = vmatmul.mubr.f32.gmra.mrb[0].mxu0 %v1676
    %v1678 = vpop.f32.mrb[0].mxu0
    %v1679 = vadd.f32 %v1574, %v1678
    %v1680 = vpop.f32.mrb[0].mxu0
    %1681 = vdwg.mxu0
    %1682 = vmatprep.subr.mxu0 0.0
    %v1683 = vand.u32 %v1218, 4294901760
    %v1684 = vsub.f32 %v1218, %v1683
    %v1685 = vand.u32 %v1684, 4294901760
    %1686 = vmatpush1.msra.mxu0 %v1685
    %1687 = vmatprep.subr.mxu0 0.0
    %v1688 = vand.u32 %v1219, 4294901760
    %v1689 = vsub.f32 %v1219, %v1688
    %v1690 = vand.u32 %v1689, 4294901760
    %1691 = vmatpush1.msra.mxu0 %v1690
    %1692 = vmatprep.subr.mxu0 0.0
    %v1693 = vand.u32 %v1220, 4294901760
    %v1694 = vsub.f32 %v1220, %v1693
    %v1695 = vand.u32 %v1694, 4294901760
    %1696 = vmatpush1.msra.mxu0 %v1695
    %1697 = vmatprep.subr.mxu0 0.0
    %v1698 = vand.u32 %v1221, 4294901760
    %v1699 = vsub.f32 %v1221, %v1698
    %v1700 = vand.u32 %v1699, 4294901760
    %1701 = vmatpush1.msra.mxu0 %v1700
    %1702 = vmatprep.subr.mxu0 0.0
    %v1703 = vand.u32 %v1222, 4294901760
    %v1704 = vsub.f32 %v1222, %v1703
    %v1705 = vand.u32 %v1704, 4294901760
    %1706 = vmatpush1.msra.mxu0 %v1705
    %1707 = vmatprep.subr.mxu0 0.0
    %v1708 = vand.u32 %v1223, 4294901760
    %v1709 = vsub.f32 %v1223, %v1708
    %v1710 = vand.u32 %v1709, 4294901760
    %1711 = vmatpush1.msra.mxu0 %v1710
    %1712 = vmatprep.subr.mxu0 0.0
    %v1713 = vand.u32 %v1224, 4294901760
    %v1714 = vsub.f32 %v1224, %v1713
    %v1715 = vand.u32 %v1714, 4294901760
    %1716 = vmatpush1.msra.mxu0 %v1715
    %1717 = vmatprep.subr.mxu0 0.0
    %v1718 = vand.u32 %v1225, 4294901760
    %v1719 = vsub.f32 %v1225, %v1718
    %v1720 = vand.u32 %v1719, 4294901760
    %1721 = vmatpush1.msra.mxu0 %v1720
    %1722 = vmatprep.subr.mxu0 0.0
    %1723 = vmatpush1.msra.mxu0 0.0
    %1724 = vmatprep.subr.mxu0 0.0
    %1725 = vmatpush1.msra.mxu0 0.0
    %1726 = vmatprep.subr.mxu0 0.0
    %1727 = vmatpush1.msra.mxu0 0.0
    %1728 = vmatprep.subr.mxu0 0.0
    %1729 = vmatpush1.msra.mxu0 0.0
    %1730 = vmatprep.subr.mxu0 0.0
    %1731 = vmatpush1.msra.mxu0 0.0
    %1732 = vmatprep.subr.mxu0 0.0
    %1733 = vmatpush1.msra.mxu0 0.0
    %1734 = vmatprep.subr.mxu0 0.0
    %1735 = vmatpush1.msra.mxu0 0.0
    %1736 = vmatprep.subr.mxu0 0.0
    %1737 = vmatpush1.msra.mxu0 0.0
    %1738 = vmatprep.subr.mxu0 0.0
    %1739 = vmatpush1.msra.mxu0 0.0
    %1740 = vmatprep.subr.mxu0 0.0
    %1741 = vmatpush1.msra.mxu0 0.0
    %1742 = vmatprep.subr.mxu0 0.0
    %1743 = vmatpush1.msra.mxu0 0.0
    %1744 = vmatprep.subr.mxu0 0.0
    %1745 = vmatpush1.msra.mxu0 0.0
    %1746 = vmatprep.subr.mxu0 0.0
    %1747 = vmatpush1.msra.mxu0 0.0
    %1748 = vmatprep.subr.mxu0 0.0
    %1749 = vmatpush1.msra.mxu0 0.0
    %1750 = vmatprep.subr.mxu0 0.0
    %1751 = vmatpush1.msra.mxu0 0.0
    %1752 = vmatprep.subr.mxu0 0.0
    %1753 = vmatpush1.msra.mxu0 0.0
    %1754 = vmatprep.subr.mxu0 0.0
    %1755 = vmatpush1.msra.mxu0 0.0
    %1756 = vmatprep.subr.mxu0 0.0
    %1757 = vmatpush1.msra.mxu0 0.0
    %1758 = vmatprep.subr.mxu0 0.0
    %1759 = vmatpush1.msra.mxu0 0.0
    %1760 = vmatprep.subr.mxu0 0.0
    %1761 = vmatpush1.msra.mxu0 0.0
    %1762 = vmatprep.subr.mxu0 0.0
    %1763 = vmatpush1.msra.mxu0 0.0
    %1764 = vmatprep.subr.mxu0 0.0
    %1765 = vmatpush1.msra.mxu0 0.0
    %1766 = vmatprep.subr.mxu0 0.0
    %1767 = vmatpush1.msra.mxu0 0.0
    %1768 = vmatprep.subr.mxu0 0.0
    %1769 = vmatpush1.msra.mxu0 0.0
    %1770 = vmatprep.mubr.f32.mxu0 0.0
    %v1771 = vand.u32 %v528, 4294901760
    %1772 = vmatmul.mubr.f32.gmra.mrb[0].mxu0 %v1771
    %v1773 = vpop.f32.mrb[0].mxu0
    %v1774 = vadd.f32 %v1655, %v1773
    %v1775 = vpop.f32.mrb[0].mxu0
    %1776 = vmatprep.mubr.f32.mxu0 0.0
    %v1777 = vand.u32 %v531, 4294901760
    %1778 = vmatmul.mubr.f32.gmra.mrb[0].mxu0 %v1777
    %v1779 = vpop.f32.mrb[0].mxu0
    %v1780 = vadd.f32 %v1663, %v1779
    %v1781 = vpop.f32.mrb[0].mxu0
    %1782 = vmatprep.mubr.f32.mxu0 0.0
    %v1783 = vand.u32 %v534, 4294901760
    %1784 = vmatmul.mubr.f32.gmra.mrb[0].mxu0 %v1783
    %v1785 = vpop.f32.mrb[0].mxu0
    %v1786 = vadd.f32 %v1671, %v1785
    %v1787 = vpop.f32.mrb[0].mxu0
    %1788 = vmatprep.mubr.f32.mxu0 0.0
    %v1789 = vand.u32 %v537, 4294901760
    %1790 = vmatmul.mubr.f32.gmra.mrb[0].mxu0 %v1789
    %v1791 = vpop.f32.mrb[0].mxu0
    %v1792 = vadd.f32 %v1679, %v1791
    %v1793 = vpop.f32.mrb[0].mxu0
    %1794 = vdwg.mxu0
    %1795 = vmatprep.subr.mxu0 0.0
    %v1796 = vand.u32 %v1218, 4294901760
    %1797 = vmatpush1.msra.mxu0 %v1796
    %1798 = vmatprep.subr.mxu0 0.0
    %v1799 = vand.u32 %v1219, 4294901760
    %1800 = vmatpush1.msra.mxu0 %v1799
    %1801 = vmatprep.subr.mxu0 0.0
    %v1802 = vand.u32 %v1220, 4294901760
    %1803 = vmatpush1.msra.mxu0 %v1802
    %1804 = vmatprep.subr.mxu0 0.0
    %v1805 = vand.u32 %v1221, 4294901760
    %1806 = vmatpush1.msra.mxu0 %v1805
    %1807 = vmatprep.subr.mxu0 0.0
    %v1808 = vand.u32 %v1222, 4294901760
    %1809 = vmatpush1.msra.mxu0 %v1808
    %1810 = vmatprep.subr.mxu0 0.0
    %v1811 = vand.u32 %v1223, 4294901760
    %1812 = vmatpush1.msra.mxu0 %v1811
    %1813 = vmatprep.subr.mxu0 0.0
    %v1814 = vand.u32 %v1224, 4294901760
    %1815 = vmatpush1.msra.mxu0 %v1814
    %1816 = vmatprep.subr.mxu0 0.0
    %v1817 = vand.u32 %v1225, 4294901760
    %1818 = vmatpush1.msra.mxu0 %v1817
    %1819 = vmatprep.subr.mxu0 0.0
    %1820 = vmatpush1.msra.mxu0 0.0
    %1821 = vmatprep.subr.mxu0 0.0
    %1822 = vmatpush1.msra.mxu0 0.0
    %1823 = vmatprep.subr.mxu0 0.0
    %1824 = vmatpush1.msra.mxu0 0.0
    %1825 = vmatprep.subr.mxu0 0.0
    %1826 = vmatpush1.msra.mxu0 0.0
    %1827 = vmatprep.subr.mxu0 0.0
    %1828 = vmatpush1.msra.mxu0 0.0
    %1829 = vmatprep.subr.mxu0 0.0
    %1830 = vmatpush1.msra.mxu0 0.0
    %1831 = vmatprep.subr.mxu0 0.0
    %1832 = vmatpush1.msra.mxu0 0.0
    %1833 = vmatprep.subr.mxu0 0.0
    %1834 = vmatpush1.msra.mxu0 0.0
    %1835 = vmatprep.subr.mxu0 0.0
    %1836 = vmatpush1.msra.mxu0 0.0
    %1837 = vmatprep.subr.mxu0 0.0
    %1838 = vmatpush1.msra.mxu0 0.0
    %1839 = vmatprep.subr.mxu0 0.0
    %1840 = vmatpush1.msra.mxu0 0.0
    %1841 = vmatprep.subr.mxu0 0.0
    %1842 = vmatpush1.msra.mxu0 0.0
    %1843 = vmatprep.subr.mxu0 0.0
    %1844 = vmatpush1.msra.mxu0 0.0
    %1845 = vmatprep.subr.mxu0 0.0
    %1846 = vmatpush1.msra.mxu0 0.0
    %1847 = vmatprep.subr.mxu0 0.0
    %1848 = vmatpush1.msra.mxu0 0.0
    %1849 = vmatprep.subr.mxu0 0.0
    %1850 = vmatpush1.msra.mxu0 0.0
    %1851 = vmatprep.subr.mxu0 0.0
    %1852 = vmatpush1.msra.mxu0 0.0
    %1853 = vmatprep.subr.mxu0 0.0
    %1854 = vmatpush1.msra.mxu0 0.0
    %1855 = vmatprep.subr.mxu0 0.0
    %1856 = vmatpush1.msra.mxu0 0.0
    %1857 = vmatprep.subr.mxu0 0.0
    %1858 = vmatpush1.msra.mxu0 0.0
    %1859 = vmatprep.subr.mxu0 0.0
    %1860 = vmatpush1.msra.mxu0 0.0
    %1861 = vmatprep.subr.mxu0 0.0
    %1862 = vmatpush1.msra.mxu0 0.0
    %1863 = vmatprep.subr.mxu0 0.0
    %1864 = vmatpush1.msra.mxu0 0.0
    %1865 = vmatprep.subr.mxu0 0.0
    %1866 = vmatpush1.msra.mxu0 0.0
    %1867 = vmatprep.mubr.f32.mxu0 0.0
    %v1868 = vand.u32 %v528, 4294901760
    %1869 = vmatmul.mubr.f32.gmra.mrb[0].mxu0 %v1868
    %v1870 = vpop.f32.mrb[0].mxu0
    %v1871 = vadd.f32 %v1774, %v1870
    %v1872 = vpop.f32.mrb[0].mxu0
    %1873 = vmatprep.mubr.f32.mxu0 0.0
    %v1874 = vand.u32 %v531, 4294901760
    %1875 = vmatmul.mubr.f32.gmra.mrb[0].mxu0 %v1874
    %v1876 = vpop.f32.mrb[0].mxu0
    %v1877 = vadd.f32 %v1780, %v1876
    %v1878 = vpop.f32.mrb[0].mxu0
    %1879 = vmatprep.mubr.f32.mxu0 0.0
    %v1880 = vand.u32 %v534, 4294901760
    %1881 = vmatmul.mubr.f32.gmra.mrb[0].mxu0 %v1880
    %v1882 = vpop.f32.mrb[0].mxu0
    %v1883 = vadd.f32 %v1786, %v1882
    %v1884 = vpop.f32.mrb[0].mxu0
    %1885 = vmatprep.mubr.f32.mxu0 0.0
    %v1886 = vand.u32 %v537, 4294901760
    %1887 = vmatmul.mubr.f32.gmra.mrb[0].mxu0 %v1886
    %v1888 = vpop.f32.mrb[0].mxu0
    %v1889 = vadd.f32 %v1792, %v1888
    %v1890 = vpop.f32.mrb[0].mxu0
    %1891 = vdwg.mxu0
    %v1892 = vadd.f32 %v1214, %v1871
    %v1893 = vadd.f32 %v1215, %v1877
    %v1894 = vadd.f32 %v1216, %v1883
    %v1895 = vadd.f32 %v1217, %v1889
    %1896 = vst.msk [vmem:[%s1213] sm:$0xff] %vm117, %v1892
    %1897 = vst.msk [vmem:[%s1213 + $0x8] sm:$0xff] %vm117, %v1893
    %1898 = vst.msk [vmem:[%s1213 + $0x10] sm:$0xff] %vm117, %v1894
    %1899 = vst.msk [vmem:[%s1213 + $0x18] sm:$0xff] %vm117, %v1895
    // Predicated region
    $region26: #{tpu_custom_call.1} parent=1 // pred_check
      _
    $region27: #{tpu_custom_call.1} parent=1 // pred_check_branch
      %1901 = sbr.rel (0) target = $region29
    $region28: #{tpu_custom_call.1} parent=1 // pred_region
      %s1903 = ssub.s32 1024, 1024
      %1904 = vsyncadd [#allocation3], %s1903
      %s1905 = sshll.u32 [#allocation2], 4
      %s1906 = int_to_ptr.vmem [resolvable:$true] %s1905
      %1911 = dma.vmem_to_hbm [thread:$0]  %s1906, 1024, %s5, [#allocation3], 128, 128, 8
    $region29: #{tpu_custom_call.1} parent=1 // pred_fallthru
      _
    // Predicated region
    $region30: #{tpu_custom_call.1} parent=1 // pred_check
      _
    $region31: #{tpu_custom_call.1} parent=1 // pred_check_branch
      %1913 = sbr.rel (0) target = $region33
    $region32: #{tpu_custom_call.1} parent=1 // pred_region
      %1914 = dma.done [#allocation3], 1024
    $region33: #{tpu_custom_call.1} parent=1 // pred_fallthru
      _
    %1915 = vsyncpa [#allocation3], 1

</llo_original>
